<compile_context>
chip_gen: v5e
topology: v5e:2x2
jax: 0.10.0
libtpu: 0.0.40
codegen_flags: <defaults>
</compile_context>

<pallas_src>
import functools
import math

import jax
import jax.numpy as jnp
from jax.experimental import pallas as pl
from jax.experimental.pallas import tpu as pltpu


# -----------------------------------------------------------------------------
# helpers
# -----------------------------------------------------------------------------
def _round_up(x, m):
    return (x + m - 1) // m * m


def _tiled_bytes(rows, cols, dtype):
    """(sublane,128)-tiled VMEM footprint of a 2-D buffer (8/16/32 sublane pack)."""
    it = jnp.dtype(dtype).itemsize
    sub = {4: 8, 2: 16, 1: 32}[it]
    return _round_up(max(rows, 1), sub) * _round_up(max(cols, 1), 128) * it


def _vmem_budget():
    """~75% of this chip's per-core VMEM (leaves compiler/double-buffer headroom)."""
    cap = 64 << 20  # conservative fallback (v7x per-TC capacity)
    try:
        cap = int(pltpu.get_tpu_info().vmem_capacity_bytes) or cap
    except Exception:
        pass
    return (cap // 4) * 3


def _pick_tm(m, row_dbuf_bytes, row_scratch_bytes, fixed_bytes, budget, cap=4096):
    """Largest M-tile (multiple of 16, <= cap) whose tiled VMEM footprint fits."""
    tm = min(cap, _round_up(max(m, 16), 16))
    while True:
        need = tm * (2 * row_dbuf_bytes + row_scratch_bytes) + fixed_bytes
        if need <= budget or tm <= 16:
            return tm
        tm = max(16, _round_up(tm // 2, 16))


# -----------------------------------------------------------------------------
# Kernel 1: generic M-tiled  out = act(x @ w + b)   (used by all encoder layers)
# -----------------------------------------------------------------------------
def _mm_bias_act_kernel(x_ref, w_ref, b_ref, o_ref, *, apply_gelu):
    acc = jnp.dot(x_ref[...], w_ref[...], preferred_element_type=jnp.float32)
    acc = acc + b_ref[...]
    if apply_gelu:
        acc = jax.nn.gelu(acc)  # tanh approx; TODO(synk): PyTorch default is exact erf
    o_ref[...] = acc.astype(o_ref.dtype)


def matmul_bias_act(x, w, b, *, apply_gelu, out_dtype=jnp.bfloat16):
    """x: (M, K) bf16, w: (K, Nc) bf16, b: (Nc,) f32 -> (M, Nc) out_dtype.
    Tiled over M (parallel grid, BlockSpec-pipelined); w/b stay VMEM-resident."""
    M, K = x.shape
    Nc = w.shape[1]
    out_it = jnp.dtype(out_dtype).itemsize
    budget = _vmem_budget()

    Kp, Np = _round_up(K, 128), _round_up(Nc, 128)
    row_dbuf = Kp * 2 + Np * out_it           # bf16 input tile + output tile (x2 buffers)
    row_scratch = Np * 4                      # f32 accumulator / activation temp
    fixed = (_tiled_bytes(K, Nc, jnp.bfloat16) + _tiled_bytes(1, Nc, jnp.float32)
             + (4 << 20))                     # weights + bias + compiler scratch headroom
    TM = _pick_tm(M, row_dbuf, row_scratch, fixed, budget, cap=4096)
    Mp = _round_up(max(M, TM), TM)
    if Mp != M:
        x = jnp.pad(x, ((0, Mp - M), (0, 0)))
    b2 = b.reshape(1, Nc).astype(jnp.float32)

    cost = pl.CostEstimate(
        flops=2 * M * K * Nc,
        transcendentals=(M * Nc) if apply_gelu else 0,
        bytes_accessed=M * K * 2 + M * Nc * out_it + K * Nc * 2 + Nc * 4)

    out = pl.pallas_call(
        functools.partial(_mm_bias_act_kernel, apply_gelu=apply_gelu),
        out_shape=jax.ShapeDtypeStruct((Mp, Nc), out_dtype),
        grid=(Mp // TM,),
        in_specs=[
            pl.BlockSpec((TM, K), lambda i: (i, 0)),
            pl.BlockSpec((K, Nc), lambda i: (0, 0)),
            pl.BlockSpec((1, Nc), lambda i: (0, 0)),
        ],
        out_specs=pl.BlockSpec((TM, Nc), lambda i: (i, 0)),
        compiler_params=pltpu.CompilerParams(
            dimension_semantics=("parallel",), vmem_limit_bytes=budget),
        cost_estimate=cost,
    )(x, w, b2)
    if Mp != M:
        out = out[:M]
    return out


# -----------------------------------------------------------------------------
# Encoder layer: 3x3 / stride-2 / pad-1 conv + bias + GELU, channel-folded taps
# -----------------------------------------------------------------------------
def conv2d_3x3_s2(x, w, b, *, apply_gelu=True):
    """x: (N,H,W,Cin) bf16, w: PyTorch layout (Cout,Cin,3,3), b: (Cout,).
    Taps are folded into the contraction axis (K = 9*Cin) so each grid step is a
    single lane-dense MXU matmul.  Returns (N, H/2, W/2, Cout) bf16."""
    N, H, W, Cin = x.shape
    Cout = w.shape[0]
    assert H % 2 == 0 and W % 2 == 0, "even spatial dims expected"
    Ho, Wo = H // 2, W // 2
    xp = jnp.pad(x, ((0, 0), (1, 1), (1, 1), (0, 0)))
    # channel-folded patch view: tap (i,j) occupies channels [(i*3+j)*Cin, ...+Cin)
    taps = [xp[:, i:i + 2 * Ho:2, j:j + 2 * Wo:2, :]
            for i in range(3) for j in range(3)]
    patches = jnp.concatenate(taps, axis=-1).reshape(N * Ho * Wo, 9 * Cin)
    wk = jnp.transpose(w, (2, 3, 1, 0)).reshape(9 * Cin, Cout).astype(jnp.bfloat16)
    y = matmul_bias_act(patches, wk, b, apply_gelu=apply_gelu)
    return y.reshape(N, Ho, Wo, Cout)


# -----------------------------------------------------------------------------
# Kernel 2: fully fused decoder (three 2x2 / stride-2 transposed convs)
# -----------------------------------------------------------------------------
def _deconv_cols(w, b, groups):
    """ConvTranspose2d(k=2,s=2) weight (Cin,Cout,2,2) -> block-diagonal matmul form.
    Block g maps input cols [g*Cin,(g+1)*Cin) to output cols laid out as (ki,kj,Cout).
    Returns ((groups*Cin, groups*4*Cout) bf16, (groups*4*Cout,) f32)."""
    Cin, Cout = int(w.shape[0]), int(w.shape[1])
    wm = jnp.transpose(w, (0, 2, 3, 1)).reshape(Cin, 4 * Cout)
    if groups > 1:
        wm = jnp.kron(jnp.eye(groups, dtype=wm.dtype), wm)
    bb = jnp.tile(b, 4 * groups)
    return wm.astype(jnp.bfloat16), bb.astype(jnp.float32)


def _decoder_kernel(x_ref, w0_ref, b0_ref, w1_ref, b1_ref, w2_ref, b2_ref, o_ref):
    y = jnp.dot(x_ref[...], w0_ref[...], preferred_element_type=jnp.float32)
    y = jax.nn.gelu(y + b0_ref[...])
    y = jnp.dot(y.astype(jnp.bfloat16), w1_ref[...], preferred_element_type=jnp.float32)
    y = jax.nn.gelu(y + b1_ref[...])
    y = jnp.dot(y.astype(jnp.bfloat16), w2_ref[...], preferred_element_type=jnp.float32)
    o_ref[...] = (y + b2_ref[...]).astype(o_ref.dtype)


def fused_decoder(x, params):
    """x: (N, H8, W8, C) bf16 -> (N, 1, 8*H8, 8*W8) f32.
    kernel==stride==2 deconvs are per-position, so all three decoder layers chain as
    matmuls (layers 2/3 block-diagonal over already-produced 2x2 sub-positions); each
    encoder position emits its 8x8 output block on the lane axis in one store."""
    N, H8, W8, C = x.shape
    M = N * H8 * W8
    w0, b0 = _deconv_cols(params["dec0_w"], params["dec0_b"], 1)
    w1, b1 = _deconv_cols(params["dec1_w"], params["dec1_b"], 4)
    w2, b2 = _deconv_cols(params["dec2_w"], params["dec2_b"], 16)
    n0, n1, n2 = int(w0.shape[1]), int(w1.shape[1]), int(w2.shape[1])
    assert n2 == 64  # 8x8 final-output block per encoder position (Cout = 1)

    xf = x.reshape(M, C)
    budget = _vmem_budget()
    row_dbuf = _round_up(C, 128) * 2 + _round_up(n2, 128) * 4
    row_scratch = (_round_up(n0, 128) + _round_up(n1, 128)) * 4
    fixed = (_tiled_bytes(C, n0, jnp.bfloat16) + _tiled_bytes(n0, n1, jnp.bfloat16)
             + _tiled_bytes(n1, n2, jnp.bfloat16)
             + 3 * _tiled_bytes(1, max(n0, n1, n2), jnp.float32) + (4 << 20))
    TM = _pick_tm(M, row_dbuf, row_scratch, fixed, budget, cap=2048)
    Mp = _round_up(max(M, TM), TM)
    if Mp != M:
        xf = jnp.pad(xf, ((0, Mp - M), (0, 0)))

    cost = pl.CostEstimate(
        flops=2 * M * (C * n0 + n0 * n1 + n1 * n2),
        transcendentals=M * (n0 + n1),
        bytes_accessed=M * (C * 2 + n2 * 4) + (C * n0 + n0 * n1 + n1 * n2) * 2)

    out = pl.pallas_call(
        _decoder_kernel,
        out_shape=jax.ShapeDtypeStruct((Mp, n2), jnp.float32),
        grid=(Mp // TM,),
        in_specs=[
            pl.BlockSpec((TM, C), lambda i: (i, 0)),
            pl.BlockSpec((C, n0), lambda i: (0, 0)),
            pl.BlockSpec((1, n0), lambda i: (0, 0)),
            pl.BlockSpec((n0, n1), lambda i: (0, 0)),
            pl.BlockSpec((1, n1), lambda i: (0, 0)),
            pl.BlockSpec((n1, n2), lambda i: (0, 0)),
            pl.BlockSpec((1, n2), lambda i: (0, 0)),
        ],
        out_specs=pl.BlockSpec((TM, n2), lambda i: (i, 0)),
        compiler_params=pltpu.CompilerParams(
            dimension_semantics=("parallel",), vmem_limit_bytes=budget),
        cost_estimate=cost,
    )(xf, w0, b0.reshape(1, n0), w1, b1.reshape(1, n1), w2, b2.reshape(1, n2))
    if Mp != M:
        out = out[:M]

    # (M, 64) -> (N, 1, 8*H8, 8*W8); the 64-axis decomposes as (ki0,kj0,ki1,kj1,ki2,kj2)
    out = out.reshape(N, H8, W8, 2, 2, 2, 2, 2, 2)
    out = jnp.transpose(out, (0, 1, 3, 5, 7, 2, 4, 6, 8))
    return out.reshape(N, 1, 8 * H8, 8 * W8)


# -----------------------------------------------------------------------------
# Parameters: xavier_normal_ weights, zero biases (matches _init_weights)
# -----------------------------------------------------------------------------
def _xavier_normal(key, shape):
    rf = 1
    for d in shape[2:]:
        rf *= d
    fan_a, fan_b = shape[0] * rf, shape[1] * rf
    std = math.sqrt(2.0 / (fan_a + fan_b))
    return std * jax.random.normal(key, shape, dtype=jnp.float32)


def init_completion_net_params(key, dims=(16, 32, 64)):
    keys = jax.random.split(key, 6)
    p = {}
    chans = (5,) + tuple(dims)
    for i in range(3):  # encoder: 3x3 conv, stride 2, pad 1
        p[f"enc{i}_w"] = _xavier_normal(keys[i], (chans[i + 1], chans[i], 3, 3))
        p[f"enc{i}_b"] = jnp.zeros((chans[i + 1],), jnp.float32)
    dchans = (dims[2], dims[1], dims[0], 1)
    for i in range(3):  # decoder: 2x2 transposed conv, stride 2
        p[f"dec{i}_w"] = _xavier_normal(keys[3 + i], (dchans[i], dchans[i + 1], 2, 2))
        p[f"dec{i}_b"] = jnp.zeros((dchans[i + 1],), jnp.float32)
    return p


# -----------------------------------------------------------------------------
# Forward:  x = cat([rgb, raw, hole_raw], dim=1); x = encoder(x); x = decoder(x)
# -----------------------------------------------------------------------------
def completion_net_forward(params, rgb, raw, hole_raw):
    x = jnp.concatenate([rgb, raw, hole_raw], axis=1)           # (N, 5, H, W) NCHW
    x = jnp.transpose(x, (0, 2, 3, 1)).astype(jnp.bfloat16)     # NHWC, bf16 activations
    for i in range(3):                                          # encoder
        x = conv2d_3x3_s2(x, params[f"enc{i}_w"], params[f"enc{i}_b"], apply_gelu=True)
    return fused_decoder(x, params)                             # (N, 1, H, W) f32


# -----------------------------------------------------------------------------
if __name__ == "__main__":
    key = jax.random.PRNGKey(0)
    k_param, k_rgb, k_raw, k_hole = jax.random.split(key, 4)

    params = init_completion_net_params(k_param)

    N, H, W = 2, 16, 16
    rgb = jax.random.normal(k_rgb, (N, 3, H, W), dtype=jnp.float32)
    raw = jax.random.normal(k_raw, (N, 1, H, W), dtype=jnp.float32)
    hole_raw = jax.random.normal(k_hole, (N, 1, H, W), dtype=jnp.float32)

    fwd = jax.jit(completion_net_forward)
    out = jax.block_until_ready(fwd(params, rgb, raw, hole_raw))

    assert out.shape == (N, 1, H, W), out.shape
    assert bool(jnp.all(jnp.isfinite(out)))
    print("KERNEL_OK")
</pallas_src>

<mosaic_0001>
module attributes {stable_mosaic.version = 11 : i64} {
  func.func @_mm_bias_act_kernel(%arg0: i32, %arg1: memref<128x45xbf16, #tpu.memory_space<vmem>>, %arg2: memref<45x16xbf16, #tpu.memory_space<vmem>>, %arg3: memref<1x16xf32, #tpu.memory_space<vmem>>, %arg4: memref<128x16xbf16, #tpu.memory_space<vmem>>) attributes {dimension_semantics = [#tpu.dimension_semantics<parallel>], iteration_bounds = array<i64: 1>, scalar_prefetch = 0 : i64, scratch_operands = 0 : i64, tpu.core_type = #tpu.core_type<tc>, window_params = [{transform_indices = @transform_0, window_bounds = array<i64: 128, 45>}, {pipeline_mode = #tpu.pipeline_mode<synchronous>, transform_indices = @transform_1, window_bounds = array<i64: 45, 16>}, {pipeline_mode = #tpu.pipeline_mode<synchronous>, transform_indices = @transform_2, window_bounds = array<i64: 1, 16>}, {transform_indices = @transform_3, window_bounds = array<i64: 128, 16>}]} {
    %c0 = arith.constant 0 : index
    %c0_0 = arith.constant 0 : index
    %0 = vector.load %arg1[%c0, %c0_0] : memref<128x45xbf16, #tpu.memory_space<vmem>>, vector<128x45xbf16>
    %c0_1 = arith.constant 0 : index
    %c0_2 = arith.constant 0 : index
    %1 = vector.load %arg2[%c0_1, %c0_2] : memref<45x16xbf16, #tpu.memory_space<vmem>>, vector<45x16xbf16>
    %cst = arith.constant dense<0.000000e+00> : vector<128x16xf32>
    %2 = tpu.matmul %0, %1, %cst {dimension_numbers = #tpu.dot_dimension_numbers<[1], [0], [0], [1], [0, 0, 1, 1], [], []>} : vector<128x45xbf16>, vector<45x16xbf16>, vector<128x16xf32> -> vector<128x16xf32>
    %c0_3 = arith.constant 0 : index
    %c0_4 = arith.constant 0 : index
    %3 = vector.load %arg3[%c0_3, %c0_4] : memref<1x16xf32, #tpu.memory_space<vmem>>, vector<1x16xf32>
    %4 = vector.broadcast %3 : vector<1x16xf32> to vector<128x16xf32>
    %5 = arith.addf %2, %4 : vector<128x16xf32>
    %6 = arith.mulf %5, %5 : vector<128x16xf32>
    %7 = arith.mulf %5, %6 : vector<128x16xf32>
    %cst_5 = arith.constant 4.471500e-02 : f32
    %8 = vector.broadcast %cst_5 : f32 to vector<128x16xf32>
    %9 = arith.mulf %8, %7 : vector<128x16xf32>
    %10 = arith.addf %5, %9 : vector<128x16xf32>
    %cst_6 = arith.constant 0.797884583 : f32
    %11 = vector.broadcast %cst_6 : f32 to vector<128x16xf32>
    %12 = arith.mulf %11, %10 : vector<128x16xf32>
    %13 = math.tanh %12 : vector<128x16xf32>
    %cst_7 = arith.constant 1.000000e+00 : f32
    %14 = vector.broadcast %cst_7 : f32 to vector<128x16xf32>
    %15 = arith.addf %14, %13 : vector<128x16xf32>
    %cst_8 = arith.constant 5.000000e-01 : f32
    %16 = vector.broadcast %cst_8 : f32 to vector<128x16xf32>
    %17 = arith.mulf %16, %15 : vector<128x16xf32>
    %18 = arith.mulf %5, %17 : vector<128x16xf32>
    %19 = arith.truncf %18 : vector<128x16xf32> to vector<128x16xbf16>
    %c0_9 = arith.constant 0 : index
    %c0_10 = arith.constant 0 : index
    %20 = vector.load %arg4[%c0_9, %c0_10] : memref<128x16xbf16, #tpu.memory_space<vmem>>, vector<128x16xbf16>
    tpu.vector_store %arg4[%c0_9, %c0_10], %19 {strides = array<i32>} : memref<128x16xbf16, #tpu.memory_space<vmem>>, vector<128x16xbf16>,
    return
  }
  func.func @transform_0(%arg0: i32) -> (i32, i32) {
    %c0_i32 = arith.constant 0 : i32
    %c0_i32_0 = arith.constant 0 : i32
    return %arg0, %c0_i32 : i32, i32
  }
  func.func @transform_1(%arg0: i32) -> (i32, i32) {
    %c0_i32 = arith.constant 0 : i32
    %c0_i32_0 = arith.constant 0 : i32
    %c0_i32_1 = arith.constant 0 : i32
    return %c0_i32, %c0_i32_0 : i32, i32
  }
  func.func @transform_2(%arg0: i32) -> (i32, i32) {
    %c0_i32 = arith.constant 0 : i32
    %c0_i32_0 = arith.constant 0 : i32
    %c0_i32_1 = arith.constant 0 : i32
    return %c0_i32, %c0_i32_0 : i32, i32
  }
  func.func @transform_3(%arg0: i32) -> (i32, i32) {
    %c0_i32 = arith.constant 0 : i32
    %c0_i32_0 = arith.constant 0 : i32
    return %arg0, %c0_i32 : i32, i32
  }
}

module attributes {stable_mosaic.version = 11 : i64} {
  func.func @_mm_bias_act_kernel(%arg0: i32, %arg1: memref<32x144xbf16, #tpu.memory_space<vmem>>, %arg2: memref<144x32xbf16, #tpu.memory_space<vmem>>, %arg3: memref<1x32xf32, #tpu.memory_space<vmem>>, %arg4: memref<32x32xbf16, #tpu.memory_space<vmem>>) attributes {dimension_semantics = [#tpu.dimension_semantics<parallel>], iteration_bounds = array<i64: 1>, scalar_prefetch = 0 : i64, scratch_operands = 0 : i64, tpu.core_type = #tpu.core_type<tc>, window_params = [{transform_indices = @transform_0, window_bounds = array<i64: 32, 144>}, {pipeline_mode = #tpu.pipeline_mode<synchronous>, transform_indices = @transform_1, window_bounds = array<i64: 144, 32>}, {pipeline_mode = #tpu.pipeline_mode<synchronous>, transform_indices = @transform_2, window_bounds = array<i64: 1, 32>}, {transform_indices = @transform_3, window_bounds = array<i64: 32, 32>}]} {
    %c0 = arith.constant 0 : index
    %c0_0 = arith.constant 0 : index
    %0 = vector.load %arg1[%c0, %c0_0] : memref<32x144xbf16, #tpu.memory_space<vmem>>, vector<32x144xbf16>
    %c0_1 = arith.constant 0 : index
    %c0_2 = arith.constant 0 : index
    %1 = vector.load %arg2[%c0_1, %c0_2] : memref<144x32xbf16, #tpu.memory_space<vmem>>, vector<144x32xbf16>
    %cst = arith.constant dense<0.000000e+00> : vector<32x32xf32>
    %2 = tpu.matmul %0, %1, %cst {dimension_numbers = #tpu.dot_dimension_numbers<[1], [0], [0], [1], [0, 0, 1, 1], [], []>} : vector<32x144xbf16>, vector<144x32xbf16>, vector<32x32xf32> -> vector<32x32xf32>
    %c0_3 = arith.constant 0 : index
    %c0_4 = arith.constant 0 : index
    %3 = vector.load %arg3[%c0_3, %c0_4] : memref<1x32xf32, #tpu.memory_space<vmem>>, vector<1x32xf32>
    %4 = vector.broadcast %3 : vector<1x32xf32> to vector<32x32xf32>
    %5 = arith.addf %2, %4 : vector<32x32xf32>
    %6 = arith.mulf %5, %5 : vector<32x32xf32>
    %7 = arith.mulf %5, %6 : vector<32x32xf32>
    %cst_5 = arith.constant 4.471500e-02 : f32
    %8 = vector.broadcast %cst_5 : f32 to vector<32x32xf32>
    %9 = arith.mulf %8, %7 : vector<32x32xf32>
    %10 = arith.addf %5, %9 : vector<32x32xf32>
    %cst_6 = arith.constant 0.797884583 : f32
    %11 = vector.broadcast %cst_6 : f32 to vector<32x32xf32>
    %12 = arith.mulf %11, %10 : vector<32x32xf32>
    %13 = math.tanh %12 : vector<32x32xf32>
    %cst_7 = arith.constant 1.000000e+00 : f32
    %14 = vector.broadcast %cst_7 : f32 to vector<32x32xf32>
    %15 = arith.addf %14, %13 : vector<32x32xf32>
    %cst_8 = arith.constant 5.000000e-01 : f32
    %16 = vector.broadcast %cst_8 : f32 to vector<32x32xf32>
    %17 = arith.mulf %16, %15 : vector<32x32xf32>
    %18 = arith.mulf %5, %17 : vector<32x32xf32>
    %19 = arith.truncf %18 : vector<32x32xf32> to vector<32x32xbf16>
    %c0_9 = arith.constant 0 : index
    %c0_10 = arith.constant 0 : index
    %20 = vector.load %arg4[%c0_9, %c0_10] : memref<32x32xbf16, #tpu.memory_space<vmem>>, vector<32x32xbf16>
    tpu.vector_store %arg4[%c0_9, %c0_10], %19 {strides = array<i32>} : memref<32x32xbf16, #tpu.memory_space<vmem>>, vector<32x32xbf16>,
    return
  }
  func.func @transform_0(%arg0: i32) -> (i32, i32) {
    %c0_i32 = arith.constant 0 : i32
    %c0_i32_0 = arith.constant 0 : i32
    return %arg0, %c0_i32 : i32, i32
  }
  func.func @transform_1(%arg0: i32) -> (i32, i32) {
    %c0_i32 = arith.constant 0 : i32
    %c0_i32_0 = arith.constant 0 : i32
    %c0_i32_1 = arith.constant 0 : i32
    return %c0_i32, %c0_i32_0 : i32, i32
  }
  func.func @transform_2(%arg0: i32) -> (i32, i32) {
    %c0_i32 = arith.constant 0 : i32
    %c0_i32_0 = arith.constant 0 : i32
    %c0_i32_1 = arith.constant 0 : i32
    return %c0_i32, %c0_i32_0 : i32, i32
  }
  func.func @transform_3(%arg0: i32) -> (i32, i32) {
    %c0_i32 = arith.constant 0 : i32
    %c0_i32_0 = arith.constant 0 : i32
    return %arg0, %c0_i32 : i32, i32
  }
}

module attributes {stable_mosaic.version = 11 : i64} {
  func.func @_mm_bias_act_kernel(%arg0: i32, %arg1: memref<16x288xbf16, #tpu.memory_space<vmem>>, %arg2: memref<288x64xbf16, #tpu.memory_space<vmem>>, %arg3: memref<1x64xf32, #tpu.memory_space<vmem>>, %arg4: memref<16x64xbf16, #tpu.memory_space<vmem>>) attributes {dimension_semantics = [#tpu.dimension_semantics<parallel>], iteration_bounds = array<i64: 1>, scalar_prefetch = 0 : i64, scratch_operands = 0 : i64, tpu.core_type = #tpu.core_type<tc>, window_params = [{transform_indices = @transform_0, window_bounds = array<i64: 16, 288>}, {pipeline_mode = #tpu.pipeline_mode<synchronous>, transform_indices = @transform_1, window_bounds = array<i64: 288, 64>}, {pipeline_mode = #tpu.pipeline_mode<synchronous>, transform_indices = @transform_2, window_bounds = array<i64: 1, 64>}, {transform_indices = @transform_3, window_bounds = array<i64: 16, 64>}]} {
    %c0 = arith.constant 0 : index
    %c0_0 = arith.constant 0 : index
    %0 = vector.load %arg1[%c0, %c0_0] : memref<16x288xbf16, #tpu.memory_space<vmem>>, vector<16x288xbf16>
    %c0_1 = arith.constant 0 : index
    %c0_2 = arith.constant 0 : index
    %1 = vector.load %arg2[%c0_1, %c0_2] : memref<288x64xbf16, #tpu.memory_space<vmem>>, vector<288x64xbf16>
    %cst = arith.constant dense<0.000000e+00> : vector<16x64xf32>
    %2 = tpu.matmul %0, %1, %cst {dimension_numbers = #tpu.dot_dimension_numbers<[1], [0], [0], [1], [0, 0, 1, 1], [], []>} : vector<16x288xbf16>, vector<288x64xbf16>, vector<16x64xf32> -> vector<16x64xf32>
    %c0_3 = arith.constant 0 : index
    %c0_4 = arith.constant 0 : index
    %3 = vector.load %arg3[%c0_3, %c0_4] : memref<1x64xf32, #tpu.memory_space<vmem>>, vector<1x64xf32>
    %4 = vector.broadcast %3 : vector<1x64xf32> to vector<16x64xf32>
    %5 = arith.addf %2, %4 : vector<16x64xf32>
    %6 = arith.mulf %5, %5 : vector<16x64xf32>
    %7 = arith.mulf %5, %6 : vector<16x64xf32>
    %cst_5 = arith.constant 4.471500e-02 : f32
    %8 = vector.broadcast %cst_5 : f32 to vector<16x64xf32>
    %9 = arith.mulf %8, %7 : vector<16x64xf32>
    %10 = arith.addf %5, %9 : vector<16x64xf32>
    %cst_6 = arith.constant 0.797884583 : f32
    %11 = vector.broadcast %cst_6 : f32 to vector<16x64xf32>
    %12 = arith.mulf %11, %10 : vector<16x64xf32>
    %13 = math.tanh %12 : vector<16x64xf32>
    %cst_7 = arith.constant 1.000000e+00 : f32
    %14 = vector.broadcast %cst_7 : f32 to vector<16x64xf32>
    %15 = arith.addf %14, %13 : vector<16x64xf32>
    %cst_8 = arith.constant 5.000000e-01 : f32
    %16 = vector.broadcast %cst_8 : f32 to vector<16x64xf32>
    %17 = arith.mulf %16, %15 : vector<16x64xf32>
    %18 = arith.mulf %5, %17 : vector<16x64xf32>
    %19 = arith.truncf %18 : vector<16x64xf32> to vector<16x64xbf16>
    %c0_9 = arith.constant 0 : index
    %c0_10 = arith.constant 0 : index
    %20 = vector.load %arg4[%c0_9, %c0_10] : memref<16x64xbf16, #tpu.memory_space<vmem>>, vector<16x64xbf16>
    tpu.vector_store %arg4[%c0_9, %c0_10], %19 {strides = array<i32>} : memref<16x64xbf16, #tpu.memory_space<vmem>>, vector<16x64xbf16>,
    return
  }
  func.func @transform_0(%arg0: i32) -> (i32, i32) {
    %c0_i32 = arith.constant 0 : i32
    %c0_i32_0 = arith.constant 0 : i32
    return %arg0, %c0_i32 : i32, i32
  }
  func.func @transform_1(%arg0: i32) -> (i32, i32) {
    %c0_i32 = arith.constant 0 : i32
    %c0_i32_0 = arith.constant 0 : i32
    %c0_i32_1 = arith.constant 0 : i32
    return %c0_i32, %c0_i32_0 : i32, i32
  }
  func.func @transform_2(%arg0: i32) -> (i32, i32) {
    %c0_i32 = arith.constant 0 : i32
    %c0_i32_0 = arith.constant 0 : i32
    %c0_i32_1 = arith.constant 0 : i32
    return %c0_i32, %c0_i32_0 : i32, i32
  }
  func.func @transform_3(%arg0: i32) -> (i32, i32) {
    %c0_i32 = arith.constant 0 : i32
    %c0_i32_0 = arith.constant 0 : i32
    return %arg0, %c0_i32 : i32, i32
  }
}

module attributes {stable_mosaic.version = 11 : i64} {
  func.func @_decoder_kernel(%arg0: i32, %arg1: memref<16x64xbf16, #tpu.memory_space<vmem>>, %arg2: memref<64x128xbf16, #tpu.memory_space<vmem>>, %arg3: memref<1x128xf32, #tpu.memory_space<vmem>>, %arg4: memref<128x256xbf16, #tpu.memory_space<vmem>>, %arg5: memref<1x256xf32, #tpu.memory_space<vmem>>, %arg6: memref<256x64xbf16, #tpu.memory_space<vmem>>, %arg7: memref<1x64xf32, #tpu.memory_space<vmem>>, %arg8: memref<16x64xf32, #tpu.memory_space<vmem>>) attributes {dimension_semantics = [#tpu.dimension_semantics<parallel>], iteration_bounds = array<i64: 1>, scalar_prefetch = 0 : i64, scratch_operands = 0 : i64, tpu.core_type = #tpu.core_type<tc>, window_params = [{transform_indices = @transform_0, window_bounds = array<i64: 16, 64>}, {pipeline_mode = #tpu.pipeline_mode<synchronous>, transform_indices = @transform_1, window_bounds = array<i64: 64, 128>}, {pipeline_mode = #tpu.pipeline_mode<synchronous>, transform_indices = @transform_2, window_bounds = array<i64: 1, 128>}, {pipeline_mode = #tpu.pipeline_mode<synchronous>, transform_indices = @transform_3, window_bounds = array<i64: 128, 256>}, {pipeline_mode = #tpu.pipeline_mode<synchronous>, transform_indices = @transform_4, window_bounds = array<i64: 1, 256>}, {pipeline_mode = #tpu.pipeline_mode<synchronous>, transform_indices = @transform_5, window_bounds = array<i64: 256, 64>}, {pipeline_mode = #tpu.pipeline_mode<synchronous>, transform_indices = @transform_6, window_bounds = array<i64: 1, 64>}, {transform_indices = @transform_7, window_bounds = array<i64: 16, 64>}]} {
    %c0 = arith.constant 0 : index
    %c0_0 = arith.constant 0 : index
    %0 = vector.load %arg1[%c0, %c0_0] : memref<16x64xbf16, #tpu.memory_space<vmem>>, vector<16x64xbf16>
    %c0_1 = arith.constant 0 : index
    %c0_2 = arith.constant 0 : index
    %1 = vector.load %arg2[%c0_1, %c0_2] : memref<64x128xbf16, #tpu.memory_space<vmem>>, vector<64x128xbf16>
    %cst = arith.constant dense<0.000000e+00> : vector<16x128xf32>
    %2 = tpu.matmul %0, %1, %cst {dimension_numbers = #tpu.dot_dimension_numbers<[1], [0], [0], [1], [0, 0, 1, 1], [], []>} : vector<16x64xbf16>, vector<64x128xbf16>, vector<16x128xf32> -> vector<16x128xf32>
    %c0_3 = arith.constant 0 : index
    %c0_4 = arith.constant 0 : index
    %3 = vector.load %arg3[%c0_3, %c0_4] : memref<1x128xf32, #tpu.memory_space<vmem>>, vector<1x128xf32>
    %4 = vector.broadcast %3 : vector<1x128xf32> to vector<16x128xf32>
    %5 = arith.addf %2, %4 : vector<16x128xf32>
    %6 = arith.mulf %5, %5 : vector<16x128xf32>
    %7 = arith.mulf %5, %6 : vector<16x128xf32>
    %cst_5 = arith.constant 4.471500e-02 : f32
    %8 = vector.broadcast %cst_5 : f32 to vector<16x128xf32>
    %9 = arith.mulf %8, %7 : vector<16x128xf32>
    %10 = arith.addf %5, %9 : vector<16x128xf32>
    %cst_6 = arith.constant 0.797884583 : f32
    %11 = vector.broadcast %cst_6 : f32 to vector<16x128xf32>
    %12 = arith.mulf %11, %10 : vector<16x128xf32>
    %13 = math.tanh %12 : vector<16x128xf32>
    %cst_7 = arith.constant 1.000000e+00 : f32
    %14 = vector.broadcast %cst_7 : f32 to vector<16x128xf32>
    %15 = arith.addf %14, %13 : vector<16x128xf32>
    %cst_8 = arith.constant 5.000000e-01 : f32
    %16 = vector.broadcast %cst_8 : f32 to vector<16x128xf32>
    %17 = arith.mulf %16, %15 : vector<16x128xf32>
    %18 = arith.mulf %5, %17 : vector<16x128xf32>
    %19 = arith.truncf %18 : vector<16x128xf32> to vector<16x128xbf16>
    %c0_9 = arith.constant 0 : index
    %c0_10 = arith.constant 0 : index
    %20 = vector.load %arg4[%c0_9, %c0_10] : memref<128x256xbf16, #tpu.memory_space<vmem>>, vector<128x256xbf16>
    %cst_11 = arith.constant dense<0.000000e+00> : vector<16x256xf32>
    %21 = tpu.matmul %19, %20, %cst_11 {dimension_numbers = #tpu.dot_dimension_numbers<[1], [0], [0], [1], [0, 0, 1, 1], [], []>} : vector<16x128xbf16>, vector<128x256xbf16>, vector<16x256xf32> -> vector<16x256xf32>
    %c0_12 = arith.constant 0 : index
    %c0_13 = arith.constant 0 : index
    %22 = vector.load %arg5[%c0_12, %c0_13] : memref<1x256xf32, #tpu.memory_space<vmem>>, vector<1x256xf32>
    %23 = vector.broadcast %22 : vector<1x256xf32> to vector<16x256xf32>
    %24 = arith.addf %21, %23 : vector<16x256xf32>
    %25 = arith.mulf %24, %24 : vector<16x256xf32>
    %26 = arith.mulf %24, %25 : vector<16x256xf32>
    %cst_14 = arith.constant 4.471500e-02 : f32
    %27 = vector.broadcast %cst_14 : f32 to vector<16x256xf32>
    %28 = arith.mulf %27, %26 : vector<16x256xf32>
    %29 = arith.addf %24, %28 : vector<16x256xf32>
    %cst_15 = arith.constant 0.797884583 : f32
    %30 = vector.broadcast %cst_15 : f32 to vector<16x256xf32>
    %31 = arith.mulf %30, %29 : vector<16x256xf32>
    %32 = math.tanh %31 : vector<16x256xf32>
    %cst_16 = arith.constant 1.000000e+00 : f32
    %33 = vector.broadcast %cst_16 : f32 to vector<16x256xf32>
    %34 = arith.addf %33, %32 : vector<16x256xf32>
    %cst_17 = arith.constant 5.000000e-01 : f32
    %35 = vector.broadcast %cst_17 : f32 to vector<16x256xf32>
    %36 = arith.mulf %35, %34 : vector<16x256xf32>
    %37 = arith.mulf %24, %36 : vector<16x256xf32>
    %38 = arith.truncf %37 : vector<16x256xf32> to vector<16x256xbf16>
    %c0_18 = arith.constant 0 : index
    %c0_19 = arith.constant 0 : index
    %39 = vector.load %arg6[%c0_18, %c0_19] : memref<256x64xbf16, #tpu.memory_space<vmem>>, vector<256x64xbf16>
    %cst_20 = arith.constant dense<0.000000e+00> : vector<16x64xf32>
    %40 = tpu.matmul %38, %39, %cst_20 {dimension_numbers = #tpu.dot_dimension_numbers<[1], [0], [0], [1], [0, 0, 1, 1], [], []>} : vector<16x256xbf16>, vector<256x64xbf16>, vector<16x64xf32> -> vector<16x64xf32>
    %c0_21 = arith.constant 0 : index
    %c0_22 = arith.constant 0 : index
    %41 = vector.load %arg7[%c0_21, %c0_22] : memref<1x64xf32, #tpu.memory_space<vmem>>, vector<1x64xf32>
    %42 = vector.broadcast %41 : vector<1x64xf32> to vector<16x64xf32>
    %43 = arith.addf %40, %42 : vector<16x64xf32>
    %c0_23 = arith.constant 0 : index
    %c0_24 = arith.constant 0 : index
    %44 = vector.load %arg8[%c0_23, %c0_24] : memref<16x64xf32, #tpu.memory_space<vmem>>, vector<16x64xf32>
    tpu.vector_store %arg8[%c0_23, %c0_24], %43 {strides = array<i32>} : memref<16x64xf32, #tpu.memory_space<vmem>>, vector<16x64xf32>,
    return
  }
  func.func @transform_0(%arg0: i32) -> (i32, i32) {
    %c0_i32 = arith.constant 0 : i32
    %c0_i32_0 = arith.constant 0 : i32
    return %arg0, %c0_i32 : i32, i32
  }
  func.func @transform_1(%arg0: i32) -> (i32, i32) {
    %c0_i32 = arith.constant 0 : i32
    %c0_i32_0 = arith.constant 0 : i32
    %c0_i32_1 = arith.constant 0 : i32
    return %c0_i32, %c0_i32_0 : i32, i32
  }
  func.func @transform_2(%arg0: i32) -> (i32, i32) {
    %c0_i32 = arith.constant 0 : i32
    %c0_i32_0 = arith.constant 0 : i32
    %c0_i32_1 = arith.constant 0 : i32
    return %c0_i32, %c0_i32_0 : i32, i32
  }
  func.func @transform_3(%arg0: i32) -> (i32, i32) {
    %c0_i32 = arith.constant 0 : i32
    %c0_i32_0 = arith.constant 0 : i32
    %c0_i32_1 = arith.constant 0 : i32
    return %c0_i32, %c0_i32_0 : i32, i32
  }
  func.func @transform_4(%arg0: i32) -> (i32, i32) {
    %c0_i32 = arith.constant 0 : i32
    %c0_i32_0 = arith.constant 0 : i32
    %c0_i32_1 = arith.constant 0 : i32
    return %c0_i32, %c0_i32_0 : i32, i32
  }
  func.func @transform_5(%arg0: i32) -> (i32, i32) {
    %c0_i32 = arith.constant 0 : i32
    %c0_i32_0 = arith.constant 0 : i32
    %c0_i32_1 = arith.constant 0 : i32
    return %c0_i32, %c0_i32_0 : i32, i32
  }
  func.func @transform_6(%arg0: i32) -> (i32, i32) {
    %c0_i32 = arith.constant 0 : i32
    %c0_i32_0 = arith.constant 0 : i32
    %c0_i32_1 = arith.constant 0 : i32
    return %c0_i32, %c0_i32_0 : i32, i32
  }
  func.func @transform_7(%arg0: i32) -> (i32, i32) {
    %c0_i32 = arith.constant 0 : i32
    %c0_i32_0 = arith.constant 0 : i32
    return %arg0, %c0_i32 : i32, i32
  }
}

</mosaic_0001>

<llo_original>
// kernel: completion_net_forward.4
$region0: #{completion_net_forward.4}
  #allocation0 [shape = 'u32[]', space=smem, size = 0x4, offset = 0x4, fixed_abs, tag = 'smem constant byte address 0x4 - core index']
  #allocation1 [shape = 'u32[72,128]{1,0:T(1,128)}', space=vmem, size = 0x9000, scoped, tag = 'internal scratch']
  %s0 = inlined_call_operand.vmem [shape: bf16[128,45], index: 0, kind: input, shape index: {}]
  %s1 = inlined_call_operand.vmem [shape: bf16[45,16], index: 1, kind: input, shape index: {}]
  %s2 = inlined_call_operand.vmem [shape: f32[1,16], index: 2, kind: input, shape index: {}]
  %s3 = inlined_call_operand.vmem [shape: bf16[128,16], index: 3, kind: output, shape index: {}]
  %s4 = sld [smem:[#allocation0]]
  $region22: #{completion_net_forward.4} parent=0
    _
  %s6 = ssub.s32 1, %s4
  %s7 = scalar_select 0, %s6, %s4
  // Predicated region
  $region2: #{completion_net_forward.4} parent=0 // pred_check
    _
  $region3: #{completion_net_forward.4} parent=0 // pred_check_branch
    %9 = sbr.rel (0) target = $region5
  $region4: #{completion_net_forward.4} parent=0 // pred_region
    _
  $region5: #{completion_net_forward.4} parent=0 // pred_fallthru
    _
  // Predicated region
  $region6: #{completion_net_forward.4} parent=0 // pred_check
    _
  $region7: #{completion_net_forward.4} parent=0 // pred_check_branch
    %11 = sbr.rel (0) target = $region9
  $region8: #{completion_net_forward.4} parent=0 // pred_region
    _
  $region9: #{completion_net_forward.4} parent=0 // pred_fallthru
    _
  // Predicated region
  $region10: #{completion_net_forward.4} parent=0 // pred_check
    _
  $region11: #{completion_net_forward.4} parent=0 // pred_check_branch
    %13 = sbr.rel (0) target = $region13
  $region12: #{completion_net_forward.4} parent=0 // pred_region
    _
  $region13: #{completion_net_forward.4} parent=0 // pred_fallthru
    _
  %v15 = vld [vmem:[%s0] sm:$0xf]
  %v16 = vld [vmem:[%s0 + $0x4] sm:$0xf]
  %v17 = vld [vmem:[%s0 + $0x8] sm:$0xf]
  %v18 = vld [vmem:[%s0 + $0xc] sm:$0xf]
  %v19 = vld [vmem:[%s0 + $0x10] sm:$0xf]
  %v20 = vld [vmem:[%s0 + $0x14] sm:$0xf]
  %v21 = vld [vmem:[%s0 + $0x18] sm:$0xf]
  %v22 = vld [vmem:[%s0 + $0x1c] sm:$0xf]
  %v23 = vld [vmem:[%s0 + $0x20] sm:$0xf]
  %v24 = vld [vmem:[%s0 + $0x24] sm:$0xf]
  %v25 = vld [vmem:[%s0 + $0x28] sm:$0xf]
  %v26 = vld [vmem:[%s0 + $0x2c] sm:$0xf]
  %v27 = vld [vmem:[%s0 + $0x30] sm:$0xf]
  %v28 = vld [vmem:[%s0 + $0x34] sm:$0xf]
  %v29 = vld [vmem:[%s0 + $0x38] sm:$0xf]
  %v30 = vld [vmem:[%s0 + $0x3c] sm:$0xf]
  %v31 = vld [vmem:[%s1] sm:$0xf]
  %v32 = vld [vmem:[%s1 + $0x4] sm:$0xf]
  %v33 = vld [vmem:[%s1 + $0x8] sm:$0xf]
  %v34 = vld [vmem:[%s1 + $0xc] sm:$0xf]
  %v35 = vld [vmem:[%s1 + $0x10] sm:$0xf]
  %v36 = vld [vmem:[%s1 + $0x14] sm:$0x7]
  %v37 = vld [vmem:[%s2] sm:$0x1]
  %v39 = vperm.slane %v37, 0
  %v57 = vunpack.c.l.b16 %v15
  %v58 = vunpack.c.l.b16 %v16
  %v59 = vunpack.c.l.b16 %v17
  %v60 = vunpack.c.l.b16 %v18
  %v61 = vunpack.c.l.b16 %v19
  %v62 = vunpack.c.l.b16 %v20
  %v63 = vunpack.c.l.b16 %v21
  %v64 = vunpack.c.l.b16 %v22
  %v65 = vunpack.c.l.b16 %v23
  %v66 = vunpack.c.l.b16 %v24
  %v67 = vunpack.c.l.b16 %v25
  %v68 = vunpack.c.l.b16 %v26
  %v69 = vunpack.c.l.b16 %v27
  %v70 = vunpack.c.l.b16 %v28
  %v71 = vunpack.c.l.b16 %v29
  %v72 = vunpack.c.l.b16 %v30
  %v73 = vpack.c.b16 %v58, %v57
  %v74 = vpack.c.b16 %v60, %v59
  %v75 = vpack.c.b16 %v62, %v61
  %v76 = vpack.c.b16 %v64, %v63
  %v77 = vpack.c.b16 %v66, %v65
  %v78 = vpack.c.b16 %v68, %v67
  %v79 = vpack.c.b16 %v70, %v69
  %v80 = vpack.c.b16 %v72, %v71
  %v87 = vunpack.c.l.b16 %v31
  %v88 = vunpack.c.l.b16 %v32
  %v89 = vunpack.c.l.b16 %v33
  %v90 = vunpack.c.l.b16 %v34
  %v91 = vunpack.c.l.b16 %v35
  %v92 = vunpack.c.l.b16 %v36
  %v93 = vpack.c.b16 %v88, %v87
  %v94 = vpack.c.b16 %v90, %v89
  %v95 = vpack.c.b16 %v92, %v91
  %vm98 = vcmask 367616
  %v100 = vsel %vm98, %v73, 0
  %v103 = vsel %vm98, %v74, 0
  %v106 = vsel %vm98, %v75, 0
  %v109 = vsel %vm98, %v76, 0
  %v112 = vsel %vm98, %v77, 0
  %v115 = vsel %vm98, %v78, 0
  %v118 = vsel %vm98, %v79, 0
  %v121 = vsel %vm98, %v80, 0
  %vm123 = vcmask 1045504
  %vm124 = vcmask 1046528
  %v125 = vsel %vm123, 4294967295, 65535
  %v126 = vsel %vm124, %v125, 0
  %v128 = vand.u32 %v95, %v126
  %130 = vmatpush.bf16.msra.mxu0 0
  %131 = vmatpush.bf16.msra.mxu0 0
  %132 = vmatpush.bf16.msra.mxu0 0
  %133 = vmatpush.bf16.msra.mxu0 0
  %134 = vmatpush.bf16.msra.mxu0 0
  %135 = vmatpush.bf16.msra.mxu0 %v128
  %136 = vmatpush.bf16.msra.mxu0 %v94
  %137 = vmatpush.bf16.msra.mxu0 %v93
  %138 = vmatmul.bf16.gmra.mxu0 %v100
  %v139 = vpop.f32.mrf.mxu0
  %v140 = vadd.f32 %v39, %v139
  %v141 = vpop.f32.mrf.mxu0
  %v142 = vadd.f32 %v39, %v141
  %143 = vmatmul.bf16.gmra.mxu0 %v103
  %v144 = vpop.f32.mrf.mxu0
  %v145 = vadd.f32 %v39, %v144
  %v146 = vpop.f32.mrf.mxu0
  %v147 = vadd.f32 %v39, %v146
  %148 = vmatmul.bf16.gmra.mxu0 %v106
  %v149 = vpop.f32.mrf.mxu0
  %v150 = vadd.f32 %v39, %v149
  %v151 = vpop.f32.mrf.mxu0
  %v152 = vadd.f32 %v39, %v151
  %153 = vmatmul.bf16.gmra.mxu0 %v109
  %v154 = vpop.f32.mrf.mxu0
  %v155 = vadd.f32 %v39, %v154
  %v156 = vpop.f32.mrf.mxu0
  %v157 = vadd.f32 %v39, %v156
  %158 = vmatmul.bf16.gmra.mxu0 %v112
  %v159 = vpop.f32.mrf.mxu0
  %v160 = vadd.f32 %v39, %v159
  %v161 = vpop.f32.mrf.mxu0
  %v162 = vadd.f32 %v39, %v161
  %163 = vmatmul.bf16.gmra.mxu0 %v115
  %v164 = vpop.f32.mrf.mxu0
  %v165 = vadd.f32 %v39, %v164
  %v166 = vpop.f32.mrf.mxu0
  %v167 = vadd.f32 %v39, %v166
  %168 = vmatmul.bf16.gmra.mxu0 %v118
  %v169 = vpop.f32.mrf.mxu0
  %v170 = vadd.f32 %v39, %v169
  %v171 = vpop.f32.mrf.mxu0
  %v172 = vadd.f32 %v39, %v171
  %173 = vmatmul.bf16.gmra.mxu0 %v121
  %v174 = vpop.f32.mrf.mxu0
  %v175 = vadd.f32 %v39, %v174
  %v176 = vpop.f32.mrf.mxu0
  %v177 = vadd.f32 %v39, %v176
  %178 = vdwg.mxu0
  %v179 = vmul.f32 %v140, %v140
  %v180 = vmul.f32 %v142, %v142
  %v181 = vmul.f32 %v145, %v145
  %v182 = vmul.f32 %v147, %v147
  %v183 = vmul.f32 %v150, %v150
  %v184 = vmul.f32 %v152, %v152
  %v185 = vmul.f32 %v155, %v155
  %v186 = vmul.f32 %v157, %v157
  %v187 = vmul.f32 %v160, %v160
  %v188 = vmul.f32 %v162, %v162
  %v189 = vmul.f32 %v165, %v165
  %v190 = vmul.f32 %v167, %v167
  %v191 = vmul.f32 %v170, %v170
  %v192 = vmul.f32 %v172, %v172
  %v193 = vmul.f32 %v175, %v175
  %v194 = vmul.f32 %v177, %v177
  %v195 = vmul.f32 %v140, %v179
  %v196 = vmul.f32 %v142, %v180
  %v197 = vmul.f32 %v145, %v181
  %v198 = vmul.f32 %v147, %v182
  %v199 = vmul.f32 %v150, %v183
  %v200 = vmul.f32 %v152, %v184
  %v201 = vmul.f32 %v155, %v185
  %v202 = vmul.f32 %v157, %v186
  %v203 = vmul.f32 %v160, %v187
  %v204 = vmul.f32 %v162, %v188
  %v205 = vmul.f32 %v165, %v189
  %v206 = vmul.f32 %v167, %v190
  %v207 = vmul.f32 %v170, %v191
  %v208 = vmul.f32 %v172, %v192
  %v209 = vmul.f32 %v175, %v193
  %v210 = vmul.f32 %v177, %v194
  %v211 = vmul.f32 %v195, 0.044715
  %v212 = vmul.f32 %v196, 0.044715
  %v213 = vmul.f32 %v197, 0.044715
  %v214 = vmul.f32 %v198, 0.044715
  %v215 = vmul.f32 %v199, 0.044715
  %v216 = vmul.f32 %v200, 0.044715
  %v217 = vmul.f32 %v201, 0.044715
  %v218 = vmul.f32 %v202, 0.044715
  %v219 = vmul.f32 %v203, 0.044715
  %v220 = vmul.f32 %v204, 0.044715
  %v221 = vmul.f32 %v205, 0.044715
  %v222 = vmul.f32 %v206, 0.044715
  %v223 = vmul.f32 %v207, 0.044715
  %v224 = vmul.f32 %v208, 0.044715
  %v225 = vmul.f32 %v209, 0.044715
  %v226 = vmul.f32 %v210, 0.044715
  %v227 = vadd.f32 %v140, %v211
  %v228 = vadd.f32 %v142, %v212
  %v229 = vadd.f32 %v145, %v213
  %v230 = vadd.f32 %v147, %v214
  %v231 = vadd.f32 %v150, %v215
  %v232 = vadd.f32 %v152, %v216
  %v233 = vadd.f32 %v155, %v217
  %v234 = vadd.f32 %v157, %v218
  %v235 = vadd.f32 %v160, %v219
  %v236 = vadd.f32 %v162, %v220
  %v237 = vadd.f32 %v165, %v221
  %v238 = vadd.f32 %v167, %v222
  %v239 = vadd.f32 %v170, %v223
  %v240 = vadd.f32 %v172, %v224
  %v241 = vadd.f32 %v175, %v225
  %v242 = vadd.f32 %v177, %v226
  %v243 = vmul.f32 %v227, 0.7978846
  %v244 = vmul.f32 %v228, 0.7978846
  %v245 = vmul.f32 %v229, 0.7978846
  %v246 = vmul.f32 %v230, 0.7978846
  %v247 = vmul.f32 %v231, 0.7978846
  %v248 = vmul.f32 %v232, 0.7978846
  %v249 = vmul.f32 %v233, 0.7978846
  %v250 = vmul.f32 %v234, 0.7978846
  %v251 = vmul.f32 %v235, 0.7978846
  %v252 = vmul.f32 %v236, 0.7978846
  %v253 = vmul.f32 %v237, 0.7978846
  %v254 = vmul.f32 %v238, 0.7978846
  %v255 = vmul.f32 %v239, 0.7978846
  %v256 = vmul.f32 %v240, 0.7978846
  %v257 = vmul.f32 %v241, 0.7978846
  %v258 = vmul.f32 %v242, 0.7978846
  %v259 = vtanh.pop %v243
  %v260 = vtanh.pop %v244
  %v261 = vtanh.pop %v245
  %v262 = vtanh.pop %v246
  %v263 = vtanh.pop %v247
  %v264 = vtanh.pop %v248
  %v265 = vtanh.pop %v249
  %v266 = vtanh.pop %v250
  %v267 = vtanh.pop %v251
  %v268 = vtanh.pop %v252
  %v269 = vtanh.pop %v253
  %v270 = vtanh.pop %v254
  %v271 = vtanh.pop %v255
  %v272 = vtanh.pop %v256
  %v273 = vtanh.pop %v257
  %v274 = vtanh.pop %v258
  %v275 = vadd.f32 %v259, 1.0
  %v276 = vadd.f32 %v260, 1.0
  %v277 = vadd.f32 %v261, 1.0
  %v278 = vadd.f32 %v262, 1.0
  %v279 = vadd.f32 %v263, 1.0
  %v280 = vadd.f32 %v264, 1.0
  %v281 = vadd.f32 %v265, 1.0
  %v282 = vadd.f32 %v266, 1.0
  %v283 = vadd.f32 %v267, 1.0
  %v284 = vadd.f32 %v268, 1.0
  %v285 = vadd.f32 %v269, 1.0
  %v286 = vadd.f32 %v270, 1.0
  %v287 = vadd.f32 %v271, 1.0
  %v288 = vadd.f32 %v272, 1.0
  %v289 = vadd.f32 %v273, 1.0
  %v290 = vadd.f32 %v274, 1.0
  %v291 = vmul.f32 %v275, 0.5
  %v292 = vmul.f32 %v276, 0.5
  %v293 = vmul.f32 %v277, 0.5
  %v294 = vmul.f32 %v278, 0.5
  %v295 = vmul.f32 %v279, 0.5
  %v296 = vmul.f32 %v280, 0.5
  %v297 = vmul.f32 %v281, 0.5
  %v298 = vmul.f32 %v282, 0.5
  %v299 = vmul.f32 %v283, 0.5
  %v300 = vmul.f32 %v284, 0.5
  %v301 = vmul.f32 %v285, 0.5
  %v302 = vmul.f32 %v286, 0.5
  %v303 = vmul.f32 %v287, 0.5
  %v304 = vmul.f32 %v288, 0.5
  %v305 = vmul.f32 %v289, 0.5
  %v306 = vmul.f32 %v290, 0.5
  %v307 = vmul.f32 %v140, %v291
  %v308 = vmul.f32 %v142, %v292
  %v309 = vmul.f32 %v145, %v293
  %v310 = vmul.f32 %v147, %v294
  %v311 = vmul.f32 %v150, %v295
  %v312 = vmul.f32 %v152, %v296
  %v313 = vmul.f32 %v155, %v297
  %v314 = vmul.f32 %v157, %v298
  %v315 = vmul.f32 %v160, %v299
  %v316 = vmul.f32 %v162, %v300
  %v317 = vmul.f32 %v165, %v301
  %v318 = vmul.f32 %v167, %v302
  %v319 = vmul.f32 %v170, %v303
  %v320 = vmul.f32 %v172, %v304
  %v321 = vmul.f32 %v175, %v305
  %v322 = vmul.f32 %v177, %v306
  %v323 = vpack.c.bf16 %v307, %v307
  %v324 = vpack.c.bf16 %v308, %v308
  %v325 = vpack.c.bf16 %v309, %v309
  %v326 = vpack.c.bf16 %v310, %v310
  %v327 = vpack.c.bf16 %v311, %v311
  %v328 = vpack.c.bf16 %v312, %v312
  %v329 = vpack.c.bf16 %v313, %v313
  %v330 = vpack.c.bf16 %v314, %v314
  %v331 = vpack.c.bf16 %v315, %v315
  %v332 = vpack.c.bf16 %v316, %v316
  %v333 = vpack.c.bf16 %v317, %v317
  %v334 = vpack.c.bf16 %v318, %v318
  %v335 = vpack.c.bf16 %v319, %v319
  %v336 = vpack.c.bf16 %v320, %v320
  %v337 = vpack.c.bf16 %v321, %v321
  %v338 = vpack.c.bf16 %v322, %v322
  %vm339 = vcmask 125952
  %340 = vst.msk [vmem:[%s3] sm:$0xf] %vm339, %v323
  %341 = vst.msk [vmem:[%s3 + $0x4] sm:$0xf] %vm339, %v324
  %342 = vst.msk [vmem:[%s3 + $0x8] sm:$0xf] %vm339, %v325
  %343 = vst.msk [vmem:[%s3 + $0xc] sm:$0xf] %vm339, %v326
  %344 = vst.msk [vmem:[%s3 + $0x10] sm:$0xf] %vm339, %v327
  %345 = vst.msk [vmem:[%s3 + $0x14] sm:$0xf] %vm339, %v328
  %346 = vst.msk [vmem:[%s3 + $0x18] sm:$0xf] %vm339, %v329
  %347 = vst.msk [vmem:[%s3 + $0x1c] sm:$0xf] %vm339, %v330
  %348 = vst.msk [vmem:[%s3 + $0x20] sm:$0xf] %vm339, %v331
  %349 = vst.msk [vmem:[%s3 + $0x24] sm:$0xf] %vm339, %v332
  %350 = vst.msk [vmem:[%s3 + $0x28] sm:$0xf] %vm339, %v333
  %351 = vst.msk [vmem:[%s3 + $0x2c] sm:$0xf] %vm339, %v334
  %352 = vst.msk [vmem:[%s3 + $0x30] sm:$0xf] %vm339, %v335
  %353 = vst.msk [vmem:[%s3 + $0x34] sm:$0xf] %vm339, %v336
  %354 = vst.msk [vmem:[%s3 + $0x38] sm:$0xf] %vm339, %v337
  %355 = vst.msk [vmem:[%s3 + $0x3c] sm:$0xf] %vm339, %v338
  // Predicated region
  $region14: #{completion_net_forward.4} parent=0 // pred_check
    _
  $region15: #{completion_net_forward.4} parent=0 // pred_check_branch
    %357 = sbr.rel (0) target = $region17
  $region16: #{completion_net_forward.4} parent=0 // pred_region
    _
  $region17: #{completion_net_forward.4} parent=0 // pred_fallthru
    _
  // Predicated region
  $region18: #{completion_net_forward.4} parent=0 // pred_check
    _
  $region19: #{completion_net_forward.4} parent=0 // pred_check_branch
    %359 = sbr.rel (0) target = $region21
  $region20: #{completion_net_forward.4} parent=0 // pred_region
    _
  $region21: #{completion_net_forward.4} parent=0 // pred_fallthru
    _

// kernel: completion_net_forward.5
$region0: #{completion_net_forward.5}
  #allocation0 [shape = 'u32[]', space=smem, size = 0x4, offset = 0x4, fixed_abs, tag = 'smem constant byte address 0x4 - core index']
  #allocation1 [shape = 'u32[72,128]{1,0:T(1,128)}', space=vmem, size = 0x9000, scoped, tag = 'internal scratch']
  %s0 = inlined_call_operand.vmem [shape: bf16[32,144], index: 0, kind: input, shape index: {}]
  %s1 = inlined_call_operand.vmem [shape: bf16[144,32], index: 1, kind: input, shape index: {}]
  %s2 = inlined_call_operand.vmem [shape: f32[1,32], index: 2, kind: input, shape index: {}]
  %s3 = inlined_call_operand.vmem [shape: bf16[32,32], index: 3, kind: output, shape index: {}]
  %s4 = sld [smem:[#allocation0]]
  $region22: #{completion_net_forward.5} parent=0
    _
  %s6 = ssub.s32 1, %s4
  %s7 = scalar_select 0, %s6, %s4
  // Predicated region
  $region2: #{completion_net_forward.5} parent=0 // pred_check
    _
  $region3: #{completion_net_forward.5} parent=0 // pred_check_branch
    %9 = sbr.rel (0) target = $region5
  $region4: #{completion_net_forward.5} parent=0 // pred_region
    _
  $region5: #{completion_net_forward.5} parent=0 // pred_fallthru
    _
  // Predicated region
  $region6: #{completion_net_forward.5} parent=0 // pred_check
    _
  $region7: #{completion_net_forward.5} parent=0 // pred_check_branch
    %11 = sbr.rel (0) target = $region9
  $region8: #{completion_net_forward.5} parent=0 // pred_region
    _
  $region9: #{completion_net_forward.5} parent=0 // pred_fallthru
    _
  // Predicated region
  $region10: #{completion_net_forward.5} parent=0 // pred_check
    _
  $region11: #{completion_net_forward.5} parent=0 // pred_check_branch
    %13 = sbr.rel (0) target = $region13
  $region12: #{completion_net_forward.5} parent=0 // pred_region
    _
  $region13: #{completion_net_forward.5} parent=0 // pred_fallthru
    _
  %v15 = vld [vmem:[%s0] sm:$0xff]
  %v16 = vld [vmem:[%s0 + $0x8] sm:$0xff]
  %v17 = vld [vmem:[%s0 + $0x10] sm:$0xff]
  %v18 = vld [vmem:[%s0 + $0x18] sm:$0xff]
  %v19 = vld [vmem:[%s1] sm:$0xf]
  %v20 = vld [vmem:[%s1 + $0x4] sm:$0xf]
  %v21 = vld [vmem:[%s1 + $0x8] sm:$0xf]
  %v22 = vld [vmem:[%s1 + $0xc] sm:$0xf]
  %v23 = vld [vmem:[%s1 + $0x10] sm:$0xf]
  %v24 = vld [vmem:[%s1 + $0x14] sm:$0xf]
  %v25 = vld [vmem:[%s1 + $0x18] sm:$0xf]
  %v26 = vld [vmem:[%s1 + $0x1c] sm:$0xf]
  %v27 = vld [vmem:[%s1 + $0x20] sm:$0xf]
  %v28 = vld [vmem:[%s1 + $0x24] sm:$0xf]
  %v29 = vld [vmem:[%s1 + $0x28] sm:$0xf]
  %v30 = vld [vmem:[%s1 + $0x2c] sm:$0xf]
  %v31 = vld [vmem:[%s1 + $0x30] sm:$0xf]
  %v32 = vld [vmem:[%s1 + $0x34] sm:$0xf]
  %v33 = vld [vmem:[%s1 + $0x38] sm:$0xf]
  %v34 = vld [vmem:[%s1 + $0x3c] sm:$0xf]
  %v35 = vld [vmem:[%s1 + $0x40] sm:$0xf]
  %v36 = vld [vmem:[%s1 + $0x44] sm:$0xf]
  %v37 = vld [vmem:[%s2] sm:$0x1]
  %v39 = vperm.slane %v37, 0
  %v45 = vunpack.c.l.b16 %v15
  %v46 = vunpack.c.h.b16 %v15
  %v47 = vunpack.c.l.b16 %v16
  %v48 = vunpack.c.h.b16 %v16
  %v49 = vunpack.c.l.b16 %v17
  %v50 = vunpack.c.h.b16 %v17
  %v51 = vunpack.c.l.b16 %v18
  %v52 = vunpack.c.h.b16 %v18
  %v53 = vpack.c.b16 %v47, %v45
  %v54 = vpack.c.b16 %v48, %v46
  %v55 = vpack.c.b16 %v51, %v49
  %v56 = vpack.c.b16 %v52, %v50
  %v77 = vunpack.c.l.b16 %v19
  %v78 = vunpack.c.l.b16 %v20
  %v79 = vunpack.c.l.b16 %v21
  %v80 = vunpack.c.l.b16 %v22
  %v81 = vunpack.c.l.b16 %v23
  %v82 = vunpack.c.l.b16 %v24
  %v83 = vunpack.c.l.b16 %v25
  %v84 = vunpack.c.l.b16 %v26
  %v85 = vunpack.c.l.b16 %v27
  %v86 = vunpack.c.l.b16 %v28
  %v87 = vunpack.c.l.b16 %v29
  %v88 = vunpack.c.l.b16 %v30
  %v89 = vunpack.c.l.b16 %v31
  %v90 = vunpack.c.l.b16 %v32
  %v91 = vunpack.c.l.b16 %v33
  %v92 = vunpack.c.l.b16 %v34
  %v93 = vunpack.c.l.b16 %v35
  %v94 = vunpack.c.l.b16 %v36
  %v95 = vpack.c.b16 %v78, %v77
  %v96 = vpack.c.b16 %v80, %v79
  %v97 = vpack.c.b16 %v82, %v81
  %v98 = vpack.c.b16 %v84, %v83
  %v99 = vpack.c.b16 %v86, %v85
  %v100 = vpack.c.b16 %v88, %v87
  %v101 = vpack.c.b16 %v90, %v89
  %v102 = vpack.c.b16 %v92, %v91
  %v103 = vpack.c.b16 %v94, %v93
  %vm113 = vcmask 130048
  %v115 = vsel %vm113, %v54, 0
  %v118 = vsel %vm113, %v56, 0
  %120 = vmatpush.bf16.msra.mxu0 %v102
  %121 = vmatpush.bf16.msra.mxu0 %v101
  %122 = vmatpush.bf16.msra.mxu0 %v100
  %123 = vmatpush.bf16.msra.mxu0 %v99
  %124 = vmatpush.bf16.msra.mxu0 %v98
  %125 = vmatpush.bf16.msra.mxu0 %v97
  %126 = vmatpush.bf16.msra.mxu0 %v96
  %127 = vmatpush.bf16.msra.mxu0 %v95
  %128 = vmatmul.bf16.gmra.mxu0 %v53
  %v129 = vpop.f32.mrf.mxu0
  %v130 = vadd.f32 %v39, %v129
  %v131 = vpop.f32.mrf.mxu0
  %v132 = vadd.f32 %v39, %v131
  %133 = vmatmul.bf16.gmra.mxu0 %v55
  %v134 = vpop.f32.mrf.mxu0
  %v135 = vadd.f32 %v39, %v134
  %v136 = vpop.f32.mrf.mxu0
  %v137 = vadd.f32 %v39, %v136
  %138 = vdwg.mxu0
  %139 = vmatpush.bf16.msra.mxu0 0
  %140 = vmatpush.bf16.msra.mxu0 0
  %141 = vmatpush.bf16.msra.mxu0 0
  %142 = vmatpush.bf16.msra.mxu0 0
  %143 = vmatpush.bf16.msra.mxu0 0
  %144 = vmatpush.bf16.msra.mxu0 0
  %145 = vmatpush.bf16.msra.mxu0 0
  %146 = vmatpush.bf16.msra.mxu0 %v103
  %147 = vmatmul.bf16.gmra.mxu0 %v115
  %v148 = vpop.f32.mrf.mxu0
  %v149 = vadd.f32 %v130, %v148
  %v150 = vpop.f32.mrf.mxu0
  %v151 = vadd.f32 %v132, %v150
  %152 = vmatmul.bf16.gmra.mxu0 %v118
  %v153 = vpop.f32.mrf.mxu0
  %v154 = vadd.f32 %v135, %v153
  %v155 = vpop.f32.mrf.mxu0
  %v156 = vadd.f32 %v137, %v155
  %157 = vdwg.mxu0
  %v158 = vmul.f32 %v149, %v149
  %v159 = vmul.f32 %v151, %v151
  %v160 = vmul.f32 %v154, %v154
  %v161 = vmul.f32 %v156, %v156
  %v162 = vmul.f32 %v149, %v158
  %v163 = vmul.f32 %v151, %v159
  %v164 = vmul.f32 %v154, %v160
  %v165 = vmul.f32 %v156, %v161
  %v166 = vmul.f32 %v162, 0.044715
  %v167 = vmul.f32 %v163, 0.044715
  %v168 = vmul.f32 %v164, 0.044715
  %v169 = vmul.f32 %v165, 0.044715
  %v170 = vadd.f32 %v149, %v166
  %v171 = vadd.f32 %v151, %v167
  %v172 = vadd.f32 %v154, %v168
  %v173 = vadd.f32 %v156, %v169
  %v174 = vmul.f32 %v170, 0.7978846
  %v175 = vmul.f32 %v171, 0.7978846
  %v176 = vmul.f32 %v172, 0.7978846
  %v177 = vmul.f32 %v173, 0.7978846
  %v178 = vtanh.pop %v174
  %v179 = vtanh.pop %v175
  %v180 = vtanh.pop %v176
  %v181 = vtanh.pop %v177
  %v182 = vadd.f32 %v178, 1.0
  %v183 = vadd.f32 %v179, 1.0
  %v184 = vadd.f32 %v180, 1.0
  %v185 = vadd.f32 %v181, 1.0
  %v186 = vmul.f32 %v182, 0.5
  %v187 = vmul.f32 %v183, 0.5
  %v188 = vmul.f32 %v184, 0.5
  %v189 = vmul.f32 %v185, 0.5
  %v190 = vmul.f32 %v149, %v186
  %v191 = vmul.f32 %v151, %v187
  %v192 = vmul.f32 %v154, %v188
  %v193 = vmul.f32 %v156, %v189
  %v194 = vpack.c.bf16 %v190, %v190
  %v195 = vpack.c.bf16 %v191, %v191
  %v196 = vpack.c.bf16 %v192, %v192
  %v197 = vpack.c.bf16 %v193, %v193
  %vm198 = vcmask 257024
  %199 = vst.msk [vmem:[%s3] sm:$0xf] %vm198, %v194
  %200 = vst.msk [vmem:[%s3 + $0x4] sm:$0xf] %vm198, %v195
  %201 = vst.msk [vmem:[%s3 + $0x8] sm:$0xf] %vm198, %v196
  %202 = vst.msk [vmem:[%s3 + $0xc] sm:$0xf] %vm198, %v197
  // Predicated region
  $region14: #{completion_net_forward.5} parent=0 // pred_check
    _
  $region15: #{completion_net_forward.5} parent=0 // pred_check_branch
    %204 = sbr.rel (0) target = $region17
  $region16: #{completion_net_forward.5} parent=0 // pred_region
    _
  $region17: #{completion_net_forward.5} parent=0 // pred_fallthru
    _
  // Predicated region
  $region18: #{completion_net_forward.5} parent=0 // pred_check
    _
  $region19: #{completion_net_forward.5} parent=0 // pred_check_branch
    %206 = sbr.rel (0) target = $region21
  $region20: #{completion_net_forward.5} parent=0 // pred_region
    _
  $region21: #{completion_net_forward.5} parent=0 // pred_fallthru
    _

// kernel: completion_net_forward.6
$region0: #{completion_net_forward.6}
  #allocation0 [shape = 'u32[]', space=smem, size = 0x4, offset = 0x4, fixed_abs, tag = 'smem constant byte address 0x4 - core index']
  #allocation1 [shape = 'u32[72,128]{1,0:T(1,128)}', space=vmem, size = 0x9000, scoped, tag = 'internal scratch']
  %s0 = inlined_call_operand.vmem [shape: bf16[16,288], index: 0, kind: input, shape index: {}]
  %s1 = inlined_call_operand.vmem [shape: bf16[288,64], index: 1, kind: input, shape index: {}]
  %s2 = inlined_call_operand.vmem [shape: f32[1,64], index: 2, kind: input, shape index: {}]
  %s3 = inlined_call_operand.vmem [shape: bf16[16,64], index: 3, kind: output, shape index: {}]
  %s4 = sld [smem:[#allocation0]]
  $region22: #{completion_net_forward.6} parent=0
    _
  %s6 = ssub.s32 1, %s4
  %s7 = scalar_select 0, %s6, %s4
  // Predicated region
  $region2: #{completion_net_forward.6} parent=0 // pred_check
    _
  $region3: #{completion_net_forward.6} parent=0 // pred_check_branch
    %9 = sbr.rel (0) target = $region5
  $region4: #{completion_net_forward.6} parent=0 // pred_region
    _
  $region5: #{completion_net_forward.6} parent=0 // pred_fallthru
    _
  // Predicated region
  $region6: #{completion_net_forward.6} parent=0 // pred_check
    _
  $region7: #{completion_net_forward.6} parent=0 // pred_check_branch
    %11 = sbr.rel (0) target = $region9
  $region8: #{completion_net_forward.6} parent=0 // pred_region
    _
  $region9: #{completion_net_forward.6} parent=0 // pred_fallthru
    _
  // Predicated region
  $region10: #{completion_net_forward.6} parent=0 // pred_check
    _
  $region11: #{completion_net_forward.6} parent=0 // pred_check_branch
    %13 = sbr.rel (0) target = $region13
  $region12: #{completion_net_forward.6} parent=0 // pred_region
    _
  $region13: #{completion_net_forward.6} parent=0 // pred_fallthru
    _
  %v15 = vld [vmem:[%s0] sm:$0xff]
  %v16 = vld [vmem:[%s0 + $0x8] sm:$0xf]
  %v17 = vld [vmem:[%s0 + $0xc] sm:$0xff]
  %v18 = vld [vmem:[%s0 + $0x14] sm:$0xf]
  %v19 = vld [vmem:[%s1] sm:$0xf]
  %v20 = vld [vmem:[%s1 + $0x4] sm:$0xf]
  %v21 = vld [vmem:[%s1 + $0x8] sm:$0xf]
  %v22 = vld [vmem:[%s1 + $0xc] sm:$0xf]
  %v23 = vld [vmem:[%s1 + $0x10] sm:$0xf]
  %v24 = vld [vmem:[%s1 + $0x14] sm:$0xf]
  %v25 = vld [vmem:[%s1 + $0x18] sm:$0xf]
  %v26 = vld [vmem:[%s1 + $0x1c] sm:$0xf]
  %v27 = vld [vmem:[%s1 + $0x20] sm:$0xf]
  %v28 = vld [vmem:[%s1 + $0x24] sm:$0xf]
  %v29 = vld [vmem:[%s1 + $0x28] sm:$0xf]
  %v30 = vld [vmem:[%s1 + $0x2c] sm:$0xf]
  %v31 = vld [vmem:[%s1 + $0x30] sm:$0xf]
  %v32 = vld [vmem:[%s1 + $0x34] sm:$0xf]
  %v33 = vld [vmem:[%s1 + $0x38] sm:$0xf]
  %v34 = vld [vmem:[%s1 + $0x3c] sm:$0xf]
  %v35 = vld [vmem:[%s1 + $0x40] sm:$0xf]
  %v36 = vld [vmem:[%s1 + $0x44] sm:$0xf]
  %v37 = vld [vmem:[%s1 + $0x48] sm:$0xf]
  %v38 = vld [vmem:[%s1 + $0x4c] sm:$0xf]
  %v39 = vld [vmem:[%s1 + $0x50] sm:$0xf]
  %v40 = vld [vmem:[%s1 + $0x54] sm:$0xf]
  %v41 = vld [vmem:[%s1 + $0x58] sm:$0xf]
  %v42 = vld [vmem:[%s1 + $0x5c] sm:$0xf]
  %v43 = vld [vmem:[%s1 + $0x60] sm:$0xf]
  %v44 = vld [vmem:[%s1 + $0x64] sm:$0xf]
  %v45 = vld [vmem:[%s1 + $0x68] sm:$0xf]
  %v46 = vld [vmem:[%s1 + $0x6c] sm:$0xf]
  %v47 = vld [vmem:[%s1 + $0x70] sm:$0xf]
  %v48 = vld [vmem:[%s1 + $0x74] sm:$0xf]
  %v49 = vld [vmem:[%s1 + $0x78] sm:$0xf]
  %v50 = vld [vmem:[%s1 + $0x7c] sm:$0xf]
  %v51 = vld [vmem:[%s1 + $0x80] sm:$0xf]
  %v52 = vld [vmem:[%s1 + $0x84] sm:$0xf]
  %v53 = vld [vmem:[%s1 + $0x88] sm:$0xf]
  %v54 = vld [vmem:[%s1 + $0x8c] sm:$0xf]
  %v55 = vld [vmem:[%s2] sm:$0x1]
  %v57 = vperm.slane %v55, 0
  %v63 = vunpack.c.l.b16 %v15
  %v64 = vunpack.c.h.b16 %v15
  %v65 = vunpack.c.l.b16 %v16
  %v66 = vunpack.c.l.b16 %v17
  %v67 = vunpack.c.h.b16 %v17
  %v68 = vunpack.c.l.b16 %v18
  %v69 = vpack.c.b16 %v66, %v63
  %v70 = vpack.c.b16 %v67, %v64
  %v71 = vpack.c.b16 %v68, %v65
  %v110 = vunpack.c.l.b16 %v19
  %v111 = vunpack.c.l.b16 %v20
  %v112 = vunpack.c.l.b16 %v21
  %v113 = vunpack.c.l.b16 %v22
  %v114 = vunpack.c.l.b16 %v23
  %v115 = vunpack.c.l.b16 %v24
  %v116 = vunpack.c.l.b16 %v25
  %v117 = vunpack.c.l.b16 %v26
  %v118 = vunpack.c.l.b16 %v27
  %v119 = vunpack.c.l.b16 %v28
  %v120 = vunpack.c.l.b16 %v29
  %v121 = vunpack.c.l.b16 %v30
  %v122 = vunpack.c.l.b16 %v31
  %v123 = vunpack.c.l.b16 %v32
  %v124 = vunpack.c.l.b16 %v33
  %v125 = vunpack.c.l.b16 %v34
  %v126 = vunpack.c.l.b16 %v35
  %v127 = vunpack.c.l.b16 %v36
  %v128 = vunpack.c.l.b16 %v37
  %v129 = vunpack.c.l.b16 %v38
  %v130 = vunpack.c.l.b16 %v39
  %v131 = vunpack.c.l.b16 %v40
  %v132 = vunpack.c.l.b16 %v41
  %v133 = vunpack.c.l.b16 %v42
  %v134 = vunpack.c.l.b16 %v43
  %v135 = vunpack.c.l.b16 %v44
  %v136 = vunpack.c.l.b16 %v45
  %v137 = vunpack.c.l.b16 %v46
  %v138 = vunpack.c.l.b16 %v47
  %v139 = vunpack.c.l.b16 %v48
  %v140 = vunpack.c.l.b16 %v49
  %v141 = vunpack.c.l.b16 %v50
  %v142 = vunpack.c.l.b16 %v51
  %v143 = vunpack.c.l.b16 %v52
  %v144 = vunpack.c.l.b16 %v53
  %v145 = vunpack.c.l.b16 %v54
  %v146 = vpack.c.b16 %v111, %v110
  %v147 = vpack.c.b16 %v113, %v112
  %v148 = vpack.c.b16 %v115, %v114
  %v149 = vpack.c.b16 %v117, %v116
  %v150 = vpack.c.b16 %v119, %v118
  %v151 = vpack.c.b16 %v121, %v120
  %v152 = vpack.c.b16 %v123, %v122
  %v153 = vpack.c.b16 %v125, %v124
  %v154 = vpack.c.b16 %v127, %v126
  %v155 = vpack.c.b16 %v129, %v128
  %v156 = vpack.c.b16 %v131, %v130
  %v157 = vpack.c.b16 %v133, %v132
  %v158 = vpack.c.b16 %v135, %v134
  %v159 = vpack.c.b16 %v137, %v136
  %v160 = vpack.c.b16 %v139, %v138
  %v161 = vpack.c.b16 %v141, %v140
  %v162 = vpack.c.b16 %v143, %v142
  %v163 = vpack.c.b16 %v145, %v144
  %vm182 = vcmask 261120
  %v184 = vsel %vm182, %v71, 0
  %186 = vmatpush.bf16.msra.mxu0 %v153
  %187 = vmatpush.bf16.msra.mxu0 %v152
  %188 = vmatpush.bf16.msra.mxu0 %v151
  %189 = vmatpush.bf16.msra.mxu0 %v150
  %190 = vmatpush.bf16.msra.mxu0 %v149
  %191 = vmatpush.bf16.msra.mxu0 %v148
  %192 = vmatpush.bf16.msra.mxu0 %v147
  %193 = vmatpush.bf16.msra.mxu0 %v146
  %194 = vmatmul.bf16.gmra.mxu0 %v69
  %v195 = vpop.f32.mrf.mxu0
  %v196 = vadd.f32 %v57, %v195
  %v197 = vpop.f32.mrf.mxu0
  %v198 = vadd.f32 %v57, %v197
  %199 = vdwg.mxu0
  %200 = vmatpush.bf16.msra.mxu0 %v161
  %201 = vmatpush.bf16.msra.mxu0 %v160
  %202 = vmatpush.bf16.msra.mxu0 %v159
  %203 = vmatpush.bf16.msra.mxu0 %v158
  %204 = vmatpush.bf16.msra.mxu0 %v157
  %205 = vmatpush.bf16.msra.mxu0 %v156
  %206 = vmatpush.bf16.msra.mxu0 %v155
  %207 = vmatpush.bf16.msra.mxu0 %v154
  %208 = vmatmul.bf16.gmra.mxu0 %v70
  %v209 = vpop.f32.mrf.mxu0
  %v210 = vadd.f32 %v196, %v209
  %v211 = vpop.f32.mrf.mxu0
  %v212 = vadd.f32 %v198, %v211
  %213 = vdwg.mxu0
  %214 = vmatpush.bf16.msra.mxu0 0
  %215 = vmatpush.bf16.msra.mxu0 0
  %216 = vmatpush.bf16.msra.mxu0 0
  %217 = vmatpush.bf16.msra.mxu0 0
  %218 = vmatpush.bf16.msra.mxu0 0
  %219 = vmatpush.bf16.msra.mxu0 0
  %220 = vmatpush.bf16.msra.mxu0 %v163
  %221 = vmatpush.bf16.msra.mxu0 %v162
  %222 = vmatmul.bf16.gmra.mxu0 %v184
  %v223 = vpop.f32.mrf.mxu0
  %v224 = vadd.f32 %v210, %v223
  %v225 = vpop.f32.mrf.mxu0
  %v226 = vadd.f32 %v212, %v225
  %227 = vdwg.mxu0
  %v228 = vmul.f32 %v224, %v224
  %v229 = vmul.f32 %v226, %v226
  %v230 = vmul.f32 %v224, %v228
  %v231 = vmul.f32 %v226, %v229
  %v232 = vmul.f32 %v230, 0.044715
  %v233 = vmul.f32 %v231, 0.044715
  %v234 = vadd.f32 %v224, %v232
  %v235 = vadd.f32 %v226, %v233
  %v236 = vmul.f32 %v234, 0.7978846
  %v237 = vmul.f32 %v235, 0.7978846
  %v238 = vtanh.pop %v236
  %v239 = vtanh.pop %v237
  %v240 = vadd.f32 %v238, 1.0
  %v241 = vadd.f32 %v239, 1.0
  %v242 = vmul.f32 %v240, 0.5
  %v243 = vmul.f32 %v241, 0.5
  %v244 = vmul.f32 %v224, %v242
  %v245 = vmul.f32 %v226, %v243
  %v246 = vpack.c.bf16 %v244, %v244
  %v247 = vpack.c.bf16 %v245, %v245
  %vm248 = vcmask 519168
  %249 = vst.msk [vmem:[%s3] sm:$0xf] %vm248, %v246
  %250 = vst.msk [vmem:[%s3 + $0x4] sm:$0xf] %vm248, %v247
  // Predicated region
  $region14: #{completion_net_forward.6} parent=0 // pred_check
    _
  $region15: #{completion_net_forward.6} parent=0 // pred_check_branch
    %252 = sbr.rel (0) target = $region17
  $region16: #{completion_net_forward.6} parent=0 // pred_region
    _
  $region17: #{completion_net_forward.6} parent=0 // pred_fallthru
    _
  // Predicated region
  $region18: #{completion_net_forward.6} parent=0 // pred_check
    _
  $region19: #{completion_net_forward.6} parent=0 // pred_check_branch
    %254 = sbr.rel (0) target = $region21
  $region20: #{completion_net_forward.6} parent=0 // pred_region
    _
  $region21: #{completion_net_forward.6} parent=0 // pred_fallthru
    _

// kernel: tile.22
$region0: #{tile.22}
  #allocation0 [shape = 's32[1]{0}', space=sflag, size = 0x4, scoped, tag = 'scoped memory for tile.22']
  %s0 = inlined_call_operand.vmem [shape: f32[16], index: 0, kind: input, shape index: {}]
  %s1 = inlined_call_operand.vmem [shape: f32[16,16], index: 1, kind: output, shape index: {}]
  // Predicated region
  $region2: #{tile.22} parent=0 // pred_check
    _
  $region3: #{tile.22} parent=0 // pred_check_branch
    %3 = sbr.rel (0) target = $region5
  $region4: #{tile.22} parent=0 // pred_region
    _
  $region5: #{tile.22} parent=0 // pred_fallthru
    _
  %v4 = vld [vmem:[%s0] ss:$0 sm:$0xff]
  %5 = vst [vmem:[%s1] sm:$0xff] %v4
  %s6 = scalar_lea.vmem %s1, 8
  %7 = vst [vmem:[%s6] sm:$0xff] %v4

// kernel: tile.28
$region0: #{tile.28}
  %s0 = inlined_call_operand.vmem [shape: f32[16,16], index: 0, kind: input, shape index: {}]
  %s1 = inlined_call_operand.vmem [shape: f32[1,256], index: 1, kind: output, shape index: {}]
  $region1: #{tile.28} parent=0
    #allocation0 [shape = 'u8[8192]{0}', space=vmem, size = 0x2000, scoped, tag = 'scoped mem for output reshape']
    %s2 = smov 3
    %v3 = vld [vmem:[%s0] ss:$8 sm:%s2]
    %vm4 = vcmask 130048
    %5 = vst.msk [vmem:[#allocation0] ss:$8 sm:$0x3] %vm4, %v3
    %s6 = scalar_lea.vmem %s0, 7
    %s7 = smov 3
    %v8 = vld [vmem:[%s6] ss:$8 sm:%s7]
    %9 = vrot.lane.b32.xlu0 %v8, 112
    %v10 = vpop.permute.xlu0 %9
    %vm11 = vcmask 1048448
    %12 = vst.msk [vmem:[#allocation0] ss:$8 sm:$0x3] %vm11, %v10
    %s13 = scalar_lea.vmem %s0, 6
    %s14 = smov 3
    %v15 = vld [vmem:[%s13] ss:$8 sm:%s14]
    %16 = vrot.lane.b32.xlu0 %v15, 96
    %v17 = vpop.permute.xlu0 %16
    %vm18 = vcmask 917248
    %19 = vst.msk [vmem:[#allocation0] ss:$8 sm:$0x3] %vm18, %v17
    %s20 = scalar_lea.vmem %s0, 5
    %s21 = smov 3
    %v22 = vld [vmem:[%s20] ss:$8 sm:%s21]
    %23 = vrot.lane.b32.xlu0 %v22, 80
    %v24 = vpop.permute.xlu0 %23
    %vm25 = vcmask 786048
    %26 = vst.msk [vmem:[#allocation0] ss:$8 sm:$0x3] %vm25, %v24
    %s27 = scalar_lea.vmem %s0, 4
    %s28 = smov 3
    %v29 = vld [vmem:[%s27] ss:$8 sm:%s28]
    %30 = vrot.lane.b32.xlu0 %v29, 64
    %v31 = vpop.permute.xlu0 %30
    %vm32 = vcmask 654848
    %33 = vst.msk [vmem:[#allocation0] ss:$8 sm:$0x3] %vm32, %v31
    %s34 = scalar_lea.vmem %s0, 3
    %s35 = smov 3
    %v36 = vld [vmem:[%s34] ss:$8 sm:%s35]
    %37 = vrot.lane.b32.xlu0 %v36, 48
    %v38 = vpop.permute.xlu0 %37
    %vm39 = vcmask 523648
    %40 = vst.msk [vmem:[#allocation0] ss:$8 sm:$0x3] %vm39, %v38
    %s41 = scalar_lea.vmem %s0, 2
    %s42 = smov 3
    %v43 = vld [vmem:[%s41] ss:$8 sm:%s42]
    %44 = vrot.lane.b32.xlu0 %v43, 32
    %v45 = vpop.permute.xlu0 %44
    %vm46 = vcmask 392448
    %47 = vst.msk [vmem:[#allocation0] ss:$8 sm:$0x3] %vm46, %v45
    %s48 = scalar_lea.vmem %s0, 1
    %s49 = smov 3
    %v50 = vld [vmem:[%s48] ss:$8 sm:%s49]
    %51 = vrot.lane.b32.xlu0 %v50, 16
    %v52 = vpop.permute.xlu0 %51
    %vm53 = vcmask 261248
    %54 = vst.msk [vmem:[#allocation0] ss:$8 sm:$0x3] %vm53, %v52
    %s56 = ssub.s32 2, 1
    %v57 = vld [vmem:[#allocation0] sm:%s56]
    %s59 = ssub.s32 2, 1
    %60 = vst [vmem:[%s1] sm:%s59] %v57
    %s61 = scalar_lea.vmem [#allocation0], 8
    %v62 = vld [vmem:[%s61] sm:%s56]
    %s64 = ssub.s32 2, 1
    %s65 = scalar_lea.vmem %s1, 1
    %66 = vst [vmem:[%s65] sm:%s64] %v62

// kernel: tile.18
$region0: #{tile.18}
  #allocation0 [shape = 's32[1]{0}', space=sflag, size = 0x4, scoped, tag = 'scoped memory for tile.18']
  %s0 = inlined_call_operand.vmem [shape: f32[32], index: 0, kind: input, shape index: {}]
  %s1 = inlined_call_operand.vmem [shape: f32[4,32], index: 1, kind: output, shape index: {}]
  // Predicated region
  $region2: #{tile.18} parent=0 // pred_check
    _
  $region3: #{tile.18} parent=0 // pred_check_branch
    %3 = sbr.rel (0) target = $region5
  $region4: #{tile.18} parent=0 // pred_region
    _
  $region5: #{tile.18} parent=0 // pred_fallthru
    _
  %v4 = vld [vmem:[%s0] ss:$0 sm:$0xff]
  %5 = vst [vmem:[%s1] sm:$0xf] %v4

// kernel: tile.27
$region0: #{tile.27}
  %s0 = inlined_call_operand.vmem [shape: f32[4,32], index: 0, kind: input, shape index: {}]
  %s1 = inlined_call_operand.vmem [shape: f32[1,128], index: 1, kind: output, shape index: {}]
  $region1: #{tile.27} parent=0
    #allocation0 [shape = 'u8[4096]{0}', space=vmem, size = 0x1000, scoped, tag = 'scoped mem for output reshape']
    #allocation1 [shape = 'u8[4096]{0}', space=vmem, size = 0x1000, scoped, tag = 'scoped mem for input reshape']
    %s3 = ssub.s32 16, 1
    %v4 = vld [vmem:[%s0] sm:%s3]
    %5 = vst [vmem:[#allocation1] sm:%s3] %v4
    %v6 = vld [vmem:[#allocation1] sm:$0x1]
    %vm7 = vcmask 261120
    %8 = vst.msk [vmem:[#allocation0] sm:$0x1] %vm7, %v6
    %s9 = scalar_lea.vmem [#allocation1], 3
    %v10 = vld [vmem:[%s9] sm:$0x1]
    %11 = vrot.lane.b32.xlu0 %v10, 96
    %v12 = vpop.permute.xlu0 %11
    %vm13 = vcmask 1048320
    %14 = vst.msk [vmem:[#allocation0] sm:$0x1] %vm13, %v12
    %s15 = scalar_lea.vmem [#allocation1], 2
    %v16 = vld [vmem:[%s15] sm:$0x1]
    %17 = vrot.lane.b32.xlu0 %v16, 64
    %v18 = vpop.permute.xlu0 %17
    %vm19 = vcmask 785920
    %20 = vst.msk [vmem:[#allocation0] sm:$0x1] %vm19, %v18
    %s21 = scalar_lea.vmem [#allocation1], 1
    %v22 = vld [vmem:[%s21] sm:$0x1]
    %23 = vrot.lane.b32.xlu0 %v22, 32
    %v24 = vpop.permute.xlu0 %23
    %vm25 = vcmask 523520
    %26 = vst.msk [vmem:[#allocation0] sm:$0x1] %vm25, %v24
    %s28 = ssub.s32 2, 1
    %v29 = vld [vmem:[#allocation0] sm:%s28]
    %s31 = ssub.s32 2, 1
    %32 = vst [vmem:[%s1] sm:%s31] %v29

// kernel: completion_net_forward.7
$region0: #{completion_net_forward.7}
  #allocation0 [shape = 'u32[]', space=smem, size = 0x4, offset = 0x4, fixed_abs, tag = 'smem constant byte address 0x4 - core index']
  #allocation1 [shape = 'u32[72,128]{1,0:T(1,128)}', space=vmem, size = 0x9000, scoped, tag = 'internal scratch']
  %s0 = inlined_call_operand.vmem [shape: bf16[16,64], index: 0, kind: input, shape index: {}]
  %s1 = inlined_call_operand.vmem [shape: bf16[64,128], index: 1, kind: input, shape index: {}]
  %s2 = inlined_call_operand.vmem [shape: f32[1,128], index: 2, kind: input, shape index: {}]
  %s3 = inlined_call_operand.vmem [shape: bf16[128,256], index: 3, kind: input, shape index: {}]
  %s4 = inlined_call_operand.vmem [shape: f32[1,256], index: 4, kind: input, shape index: {}]
  %s5 = inlined_call_operand.vmem [shape: bf16[256,64], index: 5, kind: input, shape index: {}]
  %s6 = inlined_call_operand.vmem [shape: f32[1,64], index: 6, kind: input, shape index: {}]
  %s7 = inlined_call_operand.vmem [shape: f32[16,64], index: 7, kind: output, shape index: {}]
  %s8 = sld [smem:[#allocation0]]
  $region38: #{completion_net_forward.7} parent=0
    _
  %s10 = ssub.s32 1, %s8
  %s11 = scalar_select 0, %s10, %s8
  // Predicated region
  $region2: #{completion_net_forward.7} parent=0 // pred_check
    _
  $region3: #{completion_net_forward.7} parent=0 // pred_check_branch
    %13 = sbr.rel (0) target = $region5
  $region4: #{completion_net_forward.7} parent=0 // pred_region
    _
  $region5: #{completion_net_forward.7} parent=0 // pred_fallthru
    _
  // Predicated region
  $region6: #{completion_net_forward.7} parent=0 // pred_check
    _
  $region7: #{completion_net_forward.7} parent=0 // pred_check_branch
    %15 = sbr.rel (0) target = $region9
  $region8: #{completion_net_forward.7} parent=0 // pred_region
    _
  $region9: #{completion_net_forward.7} parent=0 // pred_fallthru
    _
  // Predicated region
  $region10: #{completion_net_forward.7} parent=0 // pred_check
    _
  $region11: #{completion_net_forward.7} parent=0 // pred_check_branch
    %17 = sbr.rel (0) target = $region13
  $region12: #{completion_net_forward.7} parent=0 // pred_region
    _
  $region13: #{completion_net_forward.7} parent=0 // pred_fallthru
    _
  // Predicated region
  $region14: #{completion_net_forward.7} parent=0 // pred_check
    _
  $region15: #{completion_net_forward.7} parent=0 // pred_check_branch
    %19 = sbr.rel (0) target = $region17
  $region16: #{completion_net_forward.7} parent=0 // pred_region
    _
  $region17: #{completion_net_forward.7} parent=0 // pred_fallthru
    _
  // Predicated region
  $region18: #{completion_net_forward.7} parent=0 // pred_check
    _
  $region19: #{completion_net_forward.7} parent=0 // pred_check_branch
    %21 = sbr.rel (0) target = $region21
  $region20: #{completion_net_forward.7} parent=0 // pred_region
    _
  $region21: #{completion_net_forward.7} parent=0 // pred_fallthru
    _
  // Predicated region
  $region22: #{completion_net_forward.7} parent=0 // pred_check
    _
  $region23: #{completion_net_forward.7} parent=0 // pred_check_branch
    %23 = sbr.rel (0) target = $region25
  $region24: #{completion_net_forward.7} parent=0 // pred_region
    _
  $region25: #{completion_net_forward.7} parent=0 // pred_fallthru
    _
  // Predicated region
  $region26: #{completion_net_forward.7} parent=0 // pred_check
    _
  $region27: #{completion_net_forward.7} parent=0 // pred_check_branch
    %25 = sbr.rel (0) target = $region29
  $region28: #{completion_net_forward.7} parent=0 // pred_region
    _
  $region29: #{completion_net_forward.7} parent=0 // pred_fallthru
    _
  %v27 = vld [vmem:[%s0] sm:$0xf]
  %v28 = vld [vmem:[%s0 + $0x4] sm:$0xf]
  %v29 = vld [vmem:[%s1] sm:$0xf]
  %v30 = vld [vmem:[%s1 + $0x4] sm:$0xf]
  %v31 = vld [vmem:[%s1 + $0x8] sm:$0xf]
  %v32 = vld [vmem:[%s1 + $0xc] sm:$0xf]
  %v33 = vld [vmem:[%s1 + $0x10] sm:$0xf]
  %v34 = vld [vmem:[%s1 + $0x14] sm:$0xf]
  %v35 = vld [vmem:[%s1 + $0x18] sm:$0xf]
  %v36 = vld [vmem:[%s1 + $0x1c] sm:$0xf]
  %v37 = vld [vmem:[%s2] sm:$0x1]
  %v39 = vperm.slane %v37, 0
  %v43 = vunpack.c.l.b16 %v27
  %v44 = vunpack.c.l.b16 %v28
  %v45 = vpack.c.b16 %v44, %v43
  %v54 = vunpack.c.l.b16 %v29
  %v55 = vunpack.c.l.b16 %v30
  %v56 = vunpack.c.l.b16 %v31
  %v57 = vunpack.c.l.b16 %v32
  %v58 = vunpack.c.l.b16 %v33
  %v59 = vunpack.c.l.b16 %v34
  %v60 = vunpack.c.l.b16 %v35
  %v61 = vunpack.c.l.b16 %v36
  %v62 = vpack.c.b16 %v55, %v54
  %v63 = vpack.c.b16 %v57, %v56
  %v64 = vpack.c.b16 %v59, %v58
  %v65 = vpack.c.b16 %v61, %v60
  %vm70 = vcmask 523264
  %v72 = vsel %vm70, %v45, 0
  %74 = vmatpush.bf16.msra.mxu0 0
  %75 = vmatpush.bf16.msra.mxu0 0
  %76 = vmatpush.bf16.msra.mxu0 0
  %77 = vmatpush.bf16.msra.mxu0 0
  %78 = vmatpush.bf16.msra.mxu0 %v65
  %79 = vmatpush.bf16.msra.mxu0 %v64
  %80 = vmatpush.bf16.msra.mxu0 %v63
  %81 = vmatpush.bf16.msra.mxu0 %v62
  %82 = vmatmul.bf16.gmra.mxu0 %v72
  %v83 = vpop.f32.mrf.mxu0
  %v84 = vadd.f32 %v39, %v83
  %v85 = vpop.f32.mrf.mxu0
  %v86 = vadd.f32 %v39, %v85
  %87 = vdwg.mxu0
  %v88 = vmul.f32 %v84, %v84
  %v89 = vmul.f32 %v86, %v86
  %v90 = vmul.f32 %v84, %v88
  %v91 = vmul.f32 %v86, %v89
  %v92 = vmul.f32 %v90, 0.044715
  %v93 = vmul.f32 %v91, 0.044715
  %v94 = vadd.f32 %v84, %v92
  %v95 = vadd.f32 %v86, %v93
  %v96 = vmul.f32 %v94, 0.7978846
  %v97 = vmul.f32 %v95, 0.7978846
  %v98 = vtanh.pop %v96
  %v99 = vtanh.pop %v97
  %v100 = vadd.f32 %v98, 1.0
  %v101 = vadd.f32 %v99, 1.0
  %v102 = vmul.f32 %v100, 0.5
  %v103 = vmul.f32 %v101, 0.5
  %v104 = vmul.f32 %v84, %v102
  %v105 = vmul.f32 %v86, %v103
  %v106 = vpack.c.bf16 %v105, %v104
  %v107 = vld [vmem:[%s3] sm:$0xff]
  %v108 = vld [vmem:[%s3 + $0x8] sm:$0xff]
  %v109 = vld [vmem:[%s3 + $0x10] sm:$0xff]
  %v110 = vld [vmem:[%s3 + $0x18] sm:$0xff]
  %v111 = vld [vmem:[%s3 + $0x20] sm:$0xff]
  %v112 = vld [vmem:[%s3 + $0x28] sm:$0xff]
  %v113 = vld [vmem:[%s3 + $0x30] sm:$0xff]
  %v114 = vld [vmem:[%s3 + $0x38] sm:$0xff]
  %v115 = vld [vmem:[%s3 + $0x40] sm:$0xff]
  %v116 = vld [vmem:[%s3 + $0x48] sm:$0xff]
  %v117 = vld [vmem:[%s3 + $0x50] sm:$0xff]
  %v118 = vld [vmem:[%s3 + $0x58] sm:$0xff]
  %v119 = vld [vmem:[%s3 + $0x60] sm:$0xff]
  %v120 = vld [vmem:[%s3 + $0x68] sm:$0xff]
  %v121 = vld [vmem:[%s3 + $0x70] sm:$0xff]
  %v122 = vld [vmem:[%s3 + $0x78] sm:$0xff]
  %v123 = vld [vmem:[%s4] sm:$0x3]
  %v125 = vperm.slane %v123, 0
  %v126 = vperm.slane %v123, 1
  %v145 = vunpack.c.l.b16 %v107
  %v146 = vunpack.c.h.b16 %v107
  %v147 = vunpack.c.l.b16 %v108
  %v148 = vunpack.c.h.b16 %v108
  %v149 = vunpack.c.l.b16 %v109
  %v150 = vunpack.c.h.b16 %v109
  %v151 = vunpack.c.l.b16 %v110
  %v152 = vunpack.c.h.b16 %v110
  %v153 = vunpack.c.l.b16 %v111
  %v154 = vunpack.c.h.b16 %v111
  %v155 = vunpack.c.l.b16 %v112
  %v156 = vunpack.c.h.b16 %v112
  %v157 = vunpack.c.l.b16 %v113
  %v158 = vunpack.c.h.b16 %v113
  %v159 = vunpack.c.l.b16 %v114
  %v160 = vunpack.c.h.b16 %v114
  %v161 = vunpack.c.l.b16 %v115
  %v162 = vunpack.c.h.b16 %v115
  %v163 = vunpack.c.l.b16 %v116
  %v164 = vunpack.c.h.b16 %v116
  %v165 = vunpack.c.l.b16 %v117
  %v166 = vunpack.c.h.b16 %v117
  %v167 = vunpack.c.l.b16 %v118
  %v168 = vunpack.c.h.b16 %v118
  %v169 = vunpack.c.l.b16 %v119
  %v170 = vunpack.c.h.b16 %v119
  %v171 = vunpack.c.l.b16 %v120
  %v172 = vunpack.c.h.b16 %v120
  %v173 = vunpack.c.l.b16 %v121
  %v174 = vunpack.c.h.b16 %v121
  %v175 = vunpack.c.l.b16 %v122
  %v176 = vunpack.c.h.b16 %v122
  %v177 = vpack.c.b16 %v147, %v145
  %v178 = vpack.c.b16 %v148, %v146
  %v179 = vpack.c.b16 %v151, %v149
  %v180 = vpack.c.b16 %v152, %v150
  %v181 = vpack.c.b16 %v155, %v153
  %v182 = vpack.c.b16 %v156, %v154
  %v183 = vpack.c.b16 %v159, %v157
  %v184 = vpack.c.b16 %v160, %v158
  %v185 = vpack.c.b16 %v163, %v161
  %v186 = vpack.c.b16 %v164, %v162
  %v187 = vpack.c.b16 %v167, %v165
  %v188 = vpack.c.b16 %v168, %v166
  %v189 = vpack.c.b16 %v171, %v169
  %v190 = vpack.c.b16 %v172, %v170
  %v191 = vpack.c.b16 %v175, %v173
  %v192 = vpack.c.b16 %v176, %v174
  %209 = vmatpush.bf16.msra.mxu0 %v191
  %210 = vmatpush.bf16.msra.mxu0 %v189
  %211 = vmatpush.bf16.msra.mxu0 %v187
  %212 = vmatpush.bf16.msra.mxu0 %v185
  %213 = vmatpush.bf16.msra.mxu0 %v183
  %214 = vmatpush.bf16.msra.mxu0 %v181
  %215 = vmatpush.bf16.msra.mxu0 %v179
  %216 = vmatpush.bf16.msra.mxu0 %v177
  %217 = vmatmul.bf16.gmra.mxu0 %v106
  %v218 = vpop.f32.mrf.mxu0
  %v219 = vadd.f32 %v125, %v218
  %v220 = vpop.f32.mrf.mxu0
  %v221 = vadd.f32 %v125, %v220
  %222 = vdwg.mxu0
  %223 = vmatpush.bf16.msra.mxu0 %v192
  %224 = vmatpush.bf16.msra.mxu0 %v190
  %225 = vmatpush.bf16.msra.mxu0 %v188
  %226 = vmatpush.bf16.msra.mxu0 %v186
  %227 = vmatpush.bf16.msra.mxu0 %v184
  %228 = vmatpush.bf16.msra.mxu0 %v182
  %229 = vmatpush.bf16.msra.mxu0 %v180
  %230 = vmatpush.bf16.msra.mxu0 %v178
  %231 = vmatmul.bf16.gmra.mxu0 %v106
  %v232 = vpop.f32.mrf.mxu0
  %v233 = vadd.f32 %v126, %v232
  %v234 = vpop.f32.mrf.mxu0
  %v235 = vadd.f32 %v126, %v234
  %236 = vdwg.mxu0
  %v237 = vmul.f32 %v219, %v219
  %v238 = vmul.f32 %v233, %v233
  %v239 = vmul.f32 %v221, %v221
  %v240 = vmul.f32 %v235, %v235
  %v241 = vmul.f32 %v219, %v237
  %v242 = vmul.f32 %v233, %v238
  %v243 = vmul.f32 %v221, %v239
  %v244 = vmul.f32 %v235, %v240
  %v245 = vmul.f32 %v241, 0.044715
  %v246 = vmul.f32 %v242, 0.044715
  %v247 = vmul.f32 %v243, 0.044715
  %v248 = vmul.f32 %v244, 0.044715
  %v249 = vadd.f32 %v219, %v245
  %v250 = vadd.f32 %v233, %v246
  %v251 = vadd.f32 %v221, %v247
  %v252 = vadd.f32 %v235, %v248
  %v253 = vmul.f32 %v249, 0.7978846
  %v254 = vmul.f32 %v250, 0.7978846
  %v255 = vmul.f32 %v251, 0.7978846
  %v256 = vmul.f32 %v252, 0.7978846
  %v257 = vtanh.pop %v253
  %v258 = vtanh.pop %v254
  %v259 = vtanh.pop %v255
  %v260 = vtanh.pop %v256
  %v261 = vadd.f32 %v257, 1.0
  %v262 = vadd.f32 %v258, 1.0
  %v263 = vadd.f32 %v259, 1.0
  %v264 = vadd.f32 %v260, 1.0
  %v265 = vmul.f32 %v261, 0.5
  %v266 = vmul.f32 %v262, 0.5
  %v267 = vmul.f32 %v263, 0.5
  %v268 = vmul.f32 %v264, 0.5
  %v269 = vmul.f32 %v219, %v265
  %v270 = vmul.f32 %v233, %v266
  %v271 = vmul.f32 %v221, %v267
  %v272 = vmul.f32 %v235, %v268
  %v273 = vpack.c.bf16 %v271, %v269
  %v274 = vpack.c.bf16 %v272, %v270
  %v275 = vld [vmem:[%s5] sm:$0xf]
  %v276 = vld [vmem:[%s5 + $0x4] sm:$0xf]
  %v277 = vld [vmem:[%s5 + $0x8] sm:$0xf]
  %v278 = vld [vmem:[%s5 + $0xc] sm:$0xf]
  %v279 = vld [vmem:[%s5 + $0x10] sm:$0xf]
  %v280 = vld [vmem:[%s5 + $0x14] sm:$0xf]
  %v281 = vld [vmem:[%s5 + $0x18] sm:$0xf]
  %v282 = vld [vmem:[%s5 + $0x1c] sm:$0xf]
  %v283 = vld [vmem:[%s5 + $0x20] sm:$0xf]
  %v284 = vld [vmem:[%s5 + $0x24] sm:$0xf]
  %v285 = vld [vmem:[%s5 + $0x28] sm:$0xf]
  %v286 = vld [vmem:[%s5 + $0x2c] sm:$0xf]
  %v287 = vld [vmem:[%s5 + $0x30] sm:$0xf]
  %v288 = vld [vmem:[%s5 + $0x34] sm:$0xf]
  %v289 = vld [vmem:[%s5 + $0x38] sm:$0xf]
  %v290 = vld [vmem:[%s5 + $0x3c] sm:$0xf]
  %v291 = vld [vmem:[%s5 + $0x40] sm:$0xf]
  %v292 = vld [vmem:[%s5 + $0x44] sm:$0xf]
  %v293 = vld [vmem:[%s5 + $0x48] sm:$0xf]
  %v294 = vld [vmem:[%s5 + $0x4c] sm:$0xf]
  %v295 = vld [vmem:[%s5 + $0x50] sm:$0xf]
  %v296 = vld [vmem:[%s5 + $0x54] sm:$0xf]
  %v297 = vld [vmem:[%s5 + $0x58] sm:$0xf]
  %v298 = vld [vmem:[%s5 + $0x5c] sm:$0xf]
  %v299 = vld [vmem:[%s5 + $0x60] sm:$0xf]
  %v300 = vld [vmem:[%s5 + $0x64] sm:$0xf]
  %v301 = vld [vmem:[%s5 + $0x68] sm:$0xf]
  %v302 = vld [vmem:[%s5 + $0x6c] sm:$0xf]
  %v303 = vld [vmem:[%s5 + $0x70] sm:$0xf]
  %v304 = vld [vmem:[%s5 + $0x74] sm:$0xf]
  %v305 = vld [vmem:[%s5 + $0x78] sm:$0xf]
  %v306 = vld [vmem:[%s5 + $0x7c] sm:$0xf]
  %v307 = vld [vmem:[%s6] sm:$0x1]
  %v309 = vperm.slane %v307, 0
  %v343 = vunpack.c.l.b16 %v275
  %v344 = vunpack.c.l.b16 %v276
  %v345 = vunpack.c.l.b16 %v277
  %v346 = vunpack.c.l.b16 %v278
  %v347 = vunpack.c.l.b16 %v279
  %v348 = vunpack.c.l.b16 %v280
  %v349 = vunpack.c.l.b16 %v281
  %v350 = vunpack.c.l.b16 %v282
  %v351 = vunpack.c.l.b16 %v283
  %v352 = vunpack.c.l.b16 %v284
  %v353 = vunpack.c.l.b16 %v285
  %v354 = vunpack.c.l.b16 %v286
  %v355 = vunpack.c.l.b16 %v287
  %v356 = vunpack.c.l.b16 %v288
  %v357 = vunpack.c.l.b16 %v289
  %v358 = vunpack.c.l.b16 %v290
  %v359 = vunpack.c.l.b16 %v291
  %v360 = vunpack.c.l.b16 %v292
  %v361 = vunpack.c.l.b16 %v293
  %v362 = vunpack.c.l.b16 %v294
  %v363 = vunpack.c.l.b16 %v295
  %v364 = vunpack.c.l.b16 %v296
  %v365 = vunpack.c.l.b16 %v297
  %v366 = vunpack.c.l.b16 %v298
  %v367 = vunpack.c.l.b16 %v299
  %v368 = vunpack.c.l.b16 %v300
  %v369 = vunpack.c.l.b16 %v301
  %v370 = vunpack.c.l.b16 %v302
  %v371 = vunpack.c.l.b16 %v303
  %v372 = vunpack.c.l.b16 %v304
  %v373 = vunpack.c.l.b16 %v305
  %v374 = vunpack.c.l.b16 %v306
  %v375 = vpack.c.b16 %v344, %v343
  %v376 = vpack.c.b16 %v346, %v345
  %v377 = vpack.c.b16 %v348, %v347
  %v378 = vpack.c.b16 %v350, %v349
  %v379 = vpack.c.b16 %v352, %v351
  %v380 = vpack.c.b16 %v354, %v353
  %v381 = vpack.c.b16 %v356, %v355
  %v382 = vpack.c.b16 %v358, %v357
  %v383 = vpack.c.b16 %v360, %v359
  %v384 = vpack.c.b16 %v362, %v361
  %v385 = vpack.c.b16 %v364, %v363
  %v386 = vpack.c.b16 %v366, %v365
  %v387 = vpack.c.b16 %v368, %v367
  %v388 = vpack.c.b16 %v370, %v369
  %v389 = vpack.c.b16 %v372, %v371
  %v390 = vpack.c.b16 %v374, %v373
  %407 = vmatpush.bf16.msra.mxu0 %v382
  %408 = vmatpush.bf16.msra.mxu0 %v381
  %409 = vmatpush.bf16.msra.mxu0 %v380
  %410 = vmatpush.bf16.msra.mxu0 %v379
  %411 = vmatpush.bf16.msra.mxu0 %v378
  %412 = vmatpush.bf16.msra.mxu0 %v377
  %413 = vmatpush.bf16.msra.mxu0 %v376
  %414 = vmatpush.bf16.msra.mxu0 %v375
  %415 = vmatmul.bf16.gmra.mxu0 %v273
  %v416 = vpop.f32.mrf.mxu0
  %v417 = vadd.f32 %v309, %v416
  %v418 = vpop.f32.mrf.mxu0
  %v419 = vadd.f32 %v309, %v418
  %420 = vdwg.mxu0
  %421 = vmatpush.bf16.msra.mxu0 %v390
  %422 = vmatpush.bf16.msra.mxu0 %v389
  %423 = vmatpush.bf16.msra.mxu0 %v388
  %424 = vmatpush.bf16.msra.mxu0 %v387
  %425 = vmatpush.bf16.msra.mxu0 %v386
  %426 = vmatpush.bf16.msra.mxu0 %v385
  %427 = vmatpush.bf16.msra.mxu0 %v384
  %428 = vmatpush.bf16.msra.mxu0 %v383
  %429 = vmatmul.bf16.gmra.mxu0 %v274
  %v430 = vpop.f32.mrf.mxu0
  %v431 = vadd.f32 %v417, %v430
  %v432 = vpop.f32.mrf.mxu0
  %v433 = vadd.f32 %v419, %v432
  %434 = vdwg.mxu0
  %435 = vst.msk [vmem:[%s7] sm:$0xff] %vm70, %v431
  %436 = vst.msk [vmem:[%s7 + $0x8] sm:$0xff] %vm70, %v433
  // Predicated region
  $region30: #{completion_net_forward.7} parent=0 // pred_check
    _
  $region31: #{completion_net_forward.7} parent=0 // pred_check_branch
    %438 = sbr.rel (0) target = $region33
  $region32: #{completion_net_forward.7} parent=0 // pred_region
    _
  $region33: #{completion_net_forward.7} parent=0 // pred_fallthru
    _
  // Predicated region
  $region34: #{completion_net_forward.7} parent=0 // pred_check
    _
  $region35: #{completion_net_forward.7} parent=0 // pred_check_branch
    %440 = sbr.rel (0) target = $region37
  $region36: #{completion_net_forward.7} parent=0 // pred_region
    _
  $region37: #{completion_net_forward.7} parent=0 // pred_fallthru
    _

</llo_original>
